<compile_context>
chip_gen: v5e
topology: v5e:2x2
jax: 0.10.0
libtpu: 0.0.40
codegen_flags: <defaults>
</compile_context>

<pallas_src>
import numpy as np
import jax
import jax.numpy as jnp
from jax.experimental import pallas as pl
from jax.experimental.pallas import tpu as pltpu

TN = 256   # node-tile rows
TE = 512   # edge-tile rows
DP = 128   # padded feature width (lane-dense)


def _round_up(x, m):
    return (x + m - 1) // m * m


# ----------------------------------------------------------------------------
# Fused scatter-sum + apply kernel.
# grid = (node_tiles, max_edge_blocks_per_node_tile); the k axis accumulates into acc_ref.
#
#   prefetch: eblk_ref [n_tiles, max_k] i32  edge-block index for (node tile i, step k)
#             ecount_ref [n_tiles]      i32  number of valid edge blocks for node tile i
#   dst_ref   [1, TE]  i32   destination node of each edge in the block
#   m_ref     [TE, DP] bf16  precomputed edge messages (lanes [din:din+dout])
#   h_ref     [TN, DP] bf16  current node features      (lanes [0:din])
#   w_ap_ref  [DP, DP] bf16  packed W_apply (rows [0:din]=h part, [din:din+dout]=neigh part)
#   b_ap_ref  [1, DP]  f32
#   out_ref   [TN, DP]       layer output (bf16 for intermediate layers, f32 for the last)
#   acc_ref   [TN, DP] f32   VMEM scratch: running h_neigh for this node tile
# ----------------------------------------------------------------------------
def sagee_scatter_apply_kernel(eblk_ref, ecount_ref,
                               dst_ref, m_ref, h_ref, w_ap_ref, b_ap_ref,
                               out_ref, acc_ref):
    i = pl.program_id(0)          # node tile
    k = pl.program_id(1)          # edge-block step within this node tile
    tn = acc_ref.shape[0]
    te = dst_ref.shape[1]
    n0 = i * tn

    @pl.when(k == 0)
    def _zero_acc():
        acc_ref[...] = jnp.zeros_like(acc_ref)

    # Only the first ecount[i] steps carry real edge blocks for this node tile.
    @pl.when(k < ecount_ref[i])
    def _scatter():
        rows = n0 + jax.lax.broadcasted_iota(jnp.int32, (tn, te), 0)
        onehot = (dst_ref[...] == rows).astype(jnp.bfloat16)          # single cast
        acc_ref[...] += jnp.dot(onehot, m_ref[...],
                                preferred_element_type=jnp.float32)   # MXU scatter-sum

    @pl.when(k == pl.num_programs(1) - 1)
    def _apply():
        # h occupies lanes [0:din], acc occupies lanes [din:din+dout] -> packed concat.
        apply_in = h_ref[...].astype(jnp.float32) + acc_ref[...]
        z = jnp.dot(apply_in.astype(jnp.bfloat16), w_ap_ref[...],
                    preferred_element_type=jnp.float32) + b_ap_ref[...]
        out_ref[...] = jnp.maximum(z, 0.0).astype(out_ref.dtype)


def sagee_layer_forward(h_bf, ef_p, src_idx, edge_valid, dst_2d,
                        eblk_tbl, ecount_dev, ecount_np, max_k,
                        params_p, out_dtype):
    """One SAGEELayer on padded/sorted graph data. h_bf: [N_pad, DP] bf16."""
    w_msg_h, w_msg_e, b_msg_p, w_ap_bf, b_ap_p = params_p
    n_pad = h_bf.shape[0]
    e_pad = ef_p.shape[0]
    n_tiles = n_pad // TN

    # Hoisted per-edge message (computed once per layer, outside the (i, k) loop):
    #   m = relu( (h @ W_msg_h + b_msg)[src] + efeats @ W_msg_e )
    # Message output lanes sit at [din:din+dout] so the scatter accumulator lines up with
    # the neighbour half of the packed apply matmul inside the kernel.
    node_msg = jnp.dot(h_bf.astype(jnp.float32), w_msg_h) + b_msg_p      # [N_pad, DP] f32
    m = jax.nn.relu(node_msg[src_idx] + jnp.dot(ef_p, w_msg_e))          # [E_pad, DP] f32
    m_bf = jnp.where(edge_valid, m, 0.0).astype(jnp.bfloat16)            # zero padded edges

    n_scatter_blocks = int(ecount_np.sum())
    out_bytes = 2 if out_dtype == jnp.bfloat16 else 4
    flops = (2 * n_scatter_blocks * TN * TE * DP        # one-hot scatter matmuls
             + 2 * n_tiles * TN * DP * DP)              # packed apply matmul
    bytes_accessed = (n_scatter_blocks * (TE * DP * 2 + TE * 4)
                      + n_pad * DP * 2 + DP * DP * 2 + n_pad * DP * out_bytes)

    grid_spec = pltpu.PrefetchScalarGridSpec(
        num_scalar_prefetch=2,
        grid=(n_tiles, max_k),
        in_specs=[
            pl.BlockSpec((1, TE), lambda i, k, eblk, ec: (0, eblk[i, k])),    # dst block
            pl.BlockSpec((TE, DP), lambda i, k, eblk, ec: (eblk[i, k], 0)),   # messages
            pl.BlockSpec((TN, DP), lambda i, k, eblk, ec: (i, 0)),            # h
            pl.BlockSpec((DP, DP), lambda i, k, eblk, ec: (0, 0)),            # packed W_apply
            pl.BlockSpec((1, DP), lambda i, k, eblk, ec: (0, 0)),             # b_apply
        ],
        out_specs=pl.BlockSpec((TN, DP), lambda i, k, eblk, ec: (i, 0)),
        scratch_shapes=[pltpu.VMEM((TN, DP), jnp.float32)],
    )

    return pl.pallas_call(
        sagee_scatter_apply_kernel,
        out_shape=jax.ShapeDtypeStruct((n_pad, DP), out_dtype),
        grid_spec=grid_spec,
        compiler_params=pltpu.CompilerParams(
            dimension_semantics=("parallel", "arbitrary"),
            vmem_limit_bytes=32 * 1024 * 1024,
        ),
        cost_estimate=pl.CostEstimate(flops=flops, transcendentals=0,
                                      bytes_accessed=int(bytes_accessed)),
    )(eblk_tbl, ecount_dev, dst_2d, m_bf, h_bf, w_ap_bf, b_ap_p)


def pad_params(params_list, ndim_in, edim):
    """Split W_msg by input block, pack W_apply, transpose, zero-pad to DP lanes."""
    padded = []
    din = ndim_in
    for (W_msg, b_msg, W_apply, b_apply) in params_list:
        dout = W_msg.shape[0]
        assert din + dout <= DP and din + edim <= DP
        # Message weights map to output lanes [din : din+dout].
        w_msg_h = jnp.zeros((DP, DP), jnp.float32).at[:din, din:din + dout].set(W_msg[:, :din].T)
        w_msg_e = jnp.zeros((DP, DP), jnp.float32).at[:edim, din:din + dout].set(W_msg[:, din:].T)
        b_msg_p = jnp.zeros((DP,), jnp.float32).at[din:din + dout].set(b_msg)
        # Packed apply weight: rows [0:din] act on h, rows [din:din+dout] act on h_neigh.
        w_ap = (jnp.zeros((DP, DP), jnp.float32)
                .at[:din, :dout].set(W_apply[:, :din].T)
                .at[din:din + dout, :dout].set(W_apply[:, din:].T))
        b_ap_p = jnp.zeros((1, DP), jnp.float32).at[0, :dout].set(b_apply)
        padded.append((w_msg_h, w_msg_e, b_msg_p, w_ap.astype(jnp.bfloat16), b_ap_p))
        din = dout
    return padded


def sagee_forward(nfeats, efeats, src, dst, params_list):
    """SAGEE.forward: 4 stacked SAGEELayers (Dropout is identity in eval mode)."""
    n_nodes, ndim_in = nfeats.shape
    n_edges, edim = efeats.shape
    ndim_out = params_list[-1][0].shape[0]

    n_pad = _round_up(n_nodes, TN)
    e_pad = _round_up(n_edges, TE)
    n_tiles = n_pad // TN
    e_tiles = e_pad // TE

    # ---- host-side graph preprocessing (static structure, sorted by destination) ----
    src_np = np.asarray(jax.device_get(src)).astype(np.int32)
    dst_np = np.asarray(jax.device_get(dst)).astype(np.int32)
    order = np.argsort(dst_np, kind="stable").astype(np.int32)
    src_s = src_np[order]
    dst_s = dst_np[order]

    pad_e = e_pad - n_edges
    src_pad = np.concatenate([src_s, np.zeros(pad_e, np.int32)])
    dst_pad = np.concatenate([dst_s, np.full(pad_e, n_pad, np.int32)])  # sentinel (messages are zeroed anyway)

    # Per-node-tile edge-block ranges (edges sorted by dst -> contiguous edge-index range).
    lo_edge = np.searchsorted(dst_pad, np.arange(n_tiles) * TN, side="left")
    hi_edge = np.searchsorted(dst_pad, (np.arange(n_tiles) + 1) * TN, side="left")
    estart = np.minimum(lo_edge // TE, e_tiles - 1).astype(np.int32)
    ecount_np = np.where(hi_edge > lo_edge,
                         (hi_edge - 1) // TE + 1 - lo_edge // TE, 0).astype(np.int32)
    max_k = max(int(ecount_np.max()), 1)
    ks = np.arange(max_k)[None, :]
    eblk_np = estart[:, None] + np.minimum(ks, np.maximum(ecount_np[:, None] - 1, 0))
    eblk_np = np.minimum(eblk_np, e_tiles - 1).astype(np.int32)

    # ---- device-side padded operands ----
    ef_s = efeats[jnp.asarray(order)]
    ef_p = jnp.zeros((e_pad, DP), jnp.float32).at[:n_edges, :edim].set(ef_s)
    src_idx = jnp.asarray(src_pad)
    dst_2d = jnp.asarray(dst_pad).reshape(1, e_pad)
    edge_valid = (jnp.arange(e_pad) < n_edges)[:, None]
    eblk_tbl = jnp.asarray(eblk_np)
    ecount_dev = jnp.asarray(ecount_np)

    # Padded node features, carried padded (bf16) between layers.
    h = jnp.zeros((n_pad, DP), jnp.float32).at[:n_nodes, :ndim_in].set(nfeats)
    h = h.astype(jnp.bfloat16)

    params_padded = pad_params(params_list, ndim_in, edim)
    n_layers = len(params_padded)
    for li, params_p in enumerate(params_padded):
        out_dtype = jnp.float32 if li == n_layers - 1 else jnp.bfloat16
        h = sagee_layer_forward(h, ef_p, src_idx, edge_valid, dst_2d,
                                eblk_tbl, ecount_dev, ecount_np, max_k,
                                params_p, out_dtype)
    return h[:n_nodes, :ndim_out]


# ----------------------------------------------------------------------------
# Deterministic parameter init (mimics nn.Linear default: U(-1/sqrt(fan_in), ..))
# ----------------------------------------------------------------------------
def init_linear(key, fan_in, fan_out):
    k_w, k_b = jax.random.split(key)
    bound = 1.0 / float(fan_in) ** 0.5
    W = jax.random.uniform(k_w, (fan_out, fan_in), jnp.float32, -bound, bound)
    b = jax.random.uniform(k_b, (fan_out,), jnp.float32, -bound, bound)
    return W, b


def init_sagee(key, ndim_in, ndim_out, edim):
    layer_dims = [(ndim_in, 50), (50, 50), (50, 25), (25, ndim_out)]
    params_list = []
    for (din, dout) in layer_dims:
        key, k_msg, k_ap = jax.random.split(key, 3)
        W_msg, b_msg = init_linear(k_msg, din + edim, dout)       # Linear(din+edim, dout)
        W_apply, b_apply = init_linear(k_ap, din + dout, dout)    # Linear(din+dout, dout)
        params_list.append((W_msg, b_msg, W_apply, b_apply))
    return params_list


# ----------------------------------------------------------------------------
# Pure-JAX f32 reference (matches the PyTorch module semantics)
# ----------------------------------------------------------------------------
def sagee_reference(nfeats, efeats, src, dst, params_list):
    h = nfeats
    n_nodes = h.shape[0]
    for (W_msg, b_msg, W_apply, b_apply) in params_list:
        m = jax.nn.relu(jnp.concatenate([h[src], efeats], 1) @ W_msg.T + b_msg)
        h_neigh = jnp.zeros((n_nodes, m.shape[1]), jnp.float32).at[dst].add(m)
        h = jax.nn.relu(jnp.concatenate([h, h_neigh], 1) @ W_apply.T + b_apply)
    return h


if __name__ == "__main__":
    key = jax.random.PRNGKey(0)

    # Small synthetic graph + features (exercises multiple node and edge tiles).
    N, E = 300, 1000
    ndim_in, edim, ndim_out = 16, 8, 10

    key, k_src, k_dst, k_nf, k_ef, k_par = jax.random.split(key, 6)
    src = jax.random.randint(k_src, (E,), 0, N)
    dst = jax.random.randint(k_dst, (E,), 0, N)
    nfeats = jax.random.normal(k_nf, (N, ndim_in), jnp.float32)
    efeats = jax.random.normal(k_ef, (E, edim), jnp.float32)

    params_list = init_sagee(k_par, ndim_in, ndim_out, edim)

    out = sagee_forward(nfeats, efeats, src, dst, params_list)
    out = jax.block_until_ready(out)
    assert out.shape == (N, ndim_out), out.shape

    ref = sagee_reference(nfeats, efeats, src, dst, params_list)
    max_err = float(jnp.max(jnp.abs(out - ref)))
    # bf16 MXU inputs / bf16 inter-layer carry (f32 accumulate) + reordered edge summation.
    assert jnp.allclose(out, ref, rtol=5e-2, atol=5e-2), \
        f"mismatch vs reference, max|diff|={max_err}"

    print("KERNEL_OK")
</pallas_src>

<mosaic_0001>
module attributes {stable_mosaic.version = 11 : i64} {
  func.func @sagee_scatter_apply_kernel(%arg0: i32, %arg1: i32, %arg2: memref<2x2xi32, #tpu.memory_space<smem>>, %arg3: memref<2xi32, #tpu.memory_space<smem>>, %arg4: memref<1x512xi32, #tpu.memory_space<vmem>>, %arg5: memref<512x128xbf16, #tpu.memory_space<vmem>>, %arg6: memref<256x128xbf16, #tpu.memory_space<vmem>>, %arg7: memref<128x128xbf16, #tpu.memory_space<vmem>>, %arg8: memref<1x128xf32, #tpu.memory_space<vmem>>, %arg9: memref<256x128xbf16, #tpu.memory_space<vmem>>, %arg10: memref<256x128xf32, #tpu.memory_space<vmem>>) attributes {dimension_semantics = [#tpu.dimension_semantics<parallel>, #tpu.dimension_semantics<arbitrary>], iteration_bounds = array<i64: 2, 2>, scalar_prefetch = 2 : i64, scratch_operands = 1 : i64, tpu.core_type = #tpu.core_type<tc>, window_params = [{transform_indices = @transform_0, window_bounds = array<i64: 1, 512>}, {transform_indices = @transform_1, window_bounds = array<i64: 512, 128>}, {transform_indices = @transform_2, window_bounds = array<i64: 256, 128>}, {pipeline_mode = #tpu.pipeline_mode<synchronous>, transform_indices = @transform_3, window_bounds = array<i64: 128, 128>}, {pipeline_mode = #tpu.pipeline_mode<synchronous>, transform_indices = @transform_4, window_bounds = array<i64: 1, 128>}, {transform_indices = @transform_5, window_bounds = array<i64: 256, 128>}]} {
    %c256_i32 = arith.constant 256 : i32
    %0 = arith.muli %arg0, %c256_i32 : i32
    %c0_i32 = arith.constant 0 : i32
    %1 = arith.cmpi eq, %arg1, %c0_i32 : i32
    %2 = arith.extui %1 : i1 to i32
    %c0_i32_0 = arith.constant 0 : i32
    %3 = arith.cmpi ne, %2, %c0_i32_0 : i32
    scf.if %3 {
      %cst = arith.constant 0.000000e+00 : f32
      %12 = vector.broadcast %cst : f32 to vector<256x128xf32>
      %c0 = arith.constant 0 : index
      %c0_3 = arith.constant 0 : index
      %13 = vector.load %arg10[%c0, %c0_3] : memref<256x128xf32, #tpu.memory_space<vmem>>, vector<256x128xf32>
      tpu.vector_store %arg10[%c0, %c0_3], %12 {strides = array<i32>} : memref<256x128xf32, #tpu.memory_space<vmem>>, vector<256x128xf32>,
    } else {
    }
    %4 = arith.index_cast %arg0 : i32 to index
    %5 = memref.load %arg3[%4] : memref<2xi32, #tpu.memory_space<smem>>
    %6 = arith.cmpi slt, %arg1, %5 : i32
    %7 = arith.extui %6 : i1 to i32
    %c0_i32_1 = arith.constant 0 : i32
    %8 = arith.cmpi ne, %7, %c0_i32_1 : i32
    scf.if %8 {
      %12 = tpu.iota {dimensions = array<i32: 0>} : vector<256x512xi32>
      %13 = vector.broadcast %0 : i32 to vector<256x512xi32>
      %14 = arith.addi %13, %12 : vector<256x512xi32>
      %c0 = arith.constant 0 : index
      %c0_3 = arith.constant 0 : index
      %15 = vector.load %arg4[%c0, %c0_3] : memref<1x512xi32, #tpu.memory_space<vmem>>, vector<1x512xi32>
      %16 = vector.broadcast %15 : vector<1x512xi32> to vector<256x512xi32>
      %17 = arith.cmpi eq, %16, %14 : vector<256x512xi32>
      %18 = arith.extui %17 : vector<256x512xi1> to vector<256x512xi32>
      %19 = arith.sitofp %18 : vector<256x512xi32> to vector<256x512xf32>
      %20 = arith.truncf %19 : vector<256x512xf32> to vector<256x512xbf16>
      %c0_4 = arith.constant 0 : index
      %c0_5 = arith.constant 0 : index
      %21 = vector.load %arg10[%c0_4, %c0_5] : memref<256x128xf32, #tpu.memory_space<vmem>>, vector<256x128xf32>
      %c0_6 = arith.constant 0 : index
      %c0_7 = arith.constant 0 : index
      %22 = vector.load %arg5[%c0_6, %c0_7] : memref<512x128xbf16, #tpu.memory_space<vmem>>, vector<512x128xbf16>
      %cst = arith.constant dense<0.000000e+00> : vector<256x128xf32>
      %23 = tpu.matmul %20, %22, %cst {dimension_numbers = #tpu.dot_dimension_numbers<[1], [0], [0], [1], [0, 0, 1, 1], [], []>} : vector<256x512xbf16>, vector<512x128xbf16>, vector<256x128xf32> -> vector<256x128xf32>
      %24 = arith.addf %21, %23 : vector<256x128xf32>
      %c0_8 = arith.constant 0 : index
      %c0_9 = arith.constant 0 : index
      %25 = vector.load %arg10[%c0_8, %c0_9] : memref<256x128xf32, #tpu.memory_space<vmem>>, vector<256x128xf32>
      tpu.vector_store %arg10[%c0_8, %c0_9], %24 {strides = array<i32>} : memref<256x128xf32, #tpu.memory_space<vmem>>, vector<256x128xf32>,
    } else {
    }
    %c1_i32 = arith.constant 1 : i32
    %9 = arith.cmpi eq, %arg1, %c1_i32 : i32
    %10 = arith.extui %9 : i1 to i32
    %c0_i32_2 = arith.constant 0 : i32
    %11 = arith.cmpi ne, %10, %c0_i32_2 : i32
    scf.if %11 {
      %c0 = arith.constant 0 : index
      %c0_3 = arith.constant 0 : index
      %12 = vector.load %arg6[%c0, %c0_3] : memref<256x128xbf16, #tpu.memory_space<vmem>>, vector<256x128xbf16>
      %13 = arith.extf %12 : vector<256x128xbf16> to vector<256x128xf32>
      %c0_4 = arith.constant 0 : index
      %c0_5 = arith.constant 0 : index
      %14 = vector.load %arg10[%c0_4, %c0_5] : memref<256x128xf32, #tpu.memory_space<vmem>>, vector<256x128xf32>
      %15 = arith.addf %13, %14 : vector<256x128xf32>
      %16 = arith.truncf %15 : vector<256x128xf32> to vector<256x128xbf16>
      %c0_6 = arith.constant 0 : index
      %c0_7 = arith.constant 0 : index
      %17 = vector.load %arg7[%c0_6, %c0_7] : memref<128x128xbf16, #tpu.memory_space<vmem>>, vector<128x128xbf16>
      %cst = arith.constant dense<0.000000e+00> : vector<256x128xf32>
      %18 = tpu.matmul %16, %17, %cst {dimension_numbers = #tpu.dot_dimension_numbers<[1], [0], [0], [1], [0, 0, 1, 1], [], []>} : vector<256x128xbf16>, vector<128x128xbf16>, vector<256x128xf32> -> vector<256x128xf32>
      %c0_8 = arith.constant 0 : index
      %c0_9 = arith.constant 0 : index
      %19 = vector.load %arg8[%c0_8, %c0_9] : memref<1x128xf32, #tpu.memory_space<vmem>>, vector<1x128xf32>
      %20 = vector.broadcast %19 : vector<1x128xf32> to vector<256x128xf32>
      %21 = arith.addf %18, %20 : vector<256x128xf32>
      %cst_10 = arith.constant 0.000000e+00 : f32
      %22 = vector.broadcast %cst_10 : f32 to vector<256x128xf32>
      %23 = arith.maximumf %21, %22 : vector<256x128xf32>
      %24 = arith.truncf %23 : vector<256x128xf32> to vector<256x128xbf16>
      %c0_11 = arith.constant 0 : index
      %c0_12 = arith.constant 0 : index
      %25 = vector.load %arg9[%c0_11, %c0_12] : memref<256x128xbf16, #tpu.memory_space<vmem>>, vector<256x128xbf16>
      tpu.vector_store %arg9[%c0_11, %c0_12], %24 {strides = array<i32>} : memref<256x128xbf16, #tpu.memory_space<vmem>>, vector<256x128xbf16>,
    } else {
    }
    return
  }
  func.func @transform_0(%arg0: i32, %arg1: i32, %arg2: memref<2x2xi32, #tpu.memory_space<smem>>, %arg3: memref<2xi32, #tpu.memory_space<smem>>) -> (i32, i32) {
    %0 = arith.index_cast %arg0 : i32 to index
    %1 = arith.index_cast %arg1 : i32 to index
    %2 = memref.load %arg2[%0, %1] : memref<2x2xi32, #tpu.memory_space<smem>>
    %c0_i32 = arith.constant 0 : i32
    %c0_i32_0 = arith.constant 0 : i32
    return %c0_i32, %2 : i32, i32
  }
  func.func @transform_1(%arg0: i32, %arg1: i32, %arg2: memref<2x2xi32, #tpu.memory_space<smem>>, %arg3: memref<2xi32, #tpu.memory_space<smem>>) -> (i32, i32) {
    %0 = arith.index_cast %arg0 : i32 to index
    %1 = arith.index_cast %arg1 : i32 to index
    %2 = memref.load %arg2[%0, %1] : memref<2x2xi32, #tpu.memory_space<smem>>
    %c0_i32 = arith.constant 0 : i32
    %c0_i32_0 = arith.constant 0 : i32
    return %2, %c0_i32 : i32, i32
  }
  func.func @transform_2(%arg0: i32, %arg1: i32, %arg2: memref<2x2xi32, #tpu.memory_space<smem>>, %arg3: memref<2xi32, #tpu.memory_space<smem>>) -> (i32, i32) {
    %c0_i32 = arith.constant 0 : i32
    %c0_i32_0 = arith.constant 0 : i32
    return %arg0, %c0_i32 : i32, i32
  }
  func.func @transform_3(%arg0: i32, %arg1: i32, %arg2: memref<2x2xi32, #tpu.memory_space<smem>>, %arg3: memref<2xi32, #tpu.memory_space<smem>>) -> (i32, i32) {
    %c0_i32 = arith.constant 0 : i32
    %c0_i32_0 = arith.constant 0 : i32
    %c0_i32_1 = arith.constant 0 : i32
    return %c0_i32, %c0_i32_0 : i32, i32
  }
  func.func @transform_4(%arg0: i32, %arg1: i32, %arg2: memref<2x2xi32, #tpu.memory_space<smem>>, %arg3: memref<2xi32, #tpu.memory_space<smem>>) -> (i32, i32) {
    %c0_i32 = arith.constant 0 : i32
    %c0_i32_0 = arith.constant 0 : i32
    %c0_i32_1 = arith.constant 0 : i32
    return %c0_i32, %c0_i32_0 : i32, i32
  }
  func.func @transform_5(%arg0: i32, %arg1: i32, %arg2: memref<2x2xi32, #tpu.memory_space<smem>>, %arg3: memref<2xi32, #tpu.memory_space<smem>>) -> (i32, i32) {
    %c0_i32 = arith.constant 0 : i32
    %c0_i32_0 = arith.constant 0 : i32
    return %arg0, %c0_i32 : i32, i32
  }
}

</mosaic_0001>

<llo_original>
// kernel: tpu_custom_call.1
$region0: #{tpu_custom_call.1}
  #allocation0 [shape = 'u32[]', space=smem, size = 0x4, offset = 0x4, fixed_abs, tag = 'smem constant byte address 0x4 - core index']
  #allocation1 [shape = 'u32[72,128]{1,0:T(1,128)}', space=vmem, size = 0x9000, scoped, tag = 'internal scratch']
  #allocation2 [shape = 'f32[256,128]{1,0:T(8,128)}', space=vmem, size = 0x20000, scoped, tag = 'scratch operand']
  #allocation3 [shape = 's32[1]{0}', space=sflag, size = 0x4, scoped, tag = 'scoped memory for tpu_custom_call.1']
  #allocation4 [shape = 'u8[1024]{0}', space=smem, size = 0x400, scoped, tag = 'prefetched SMEM operand 0']
  #allocation5 [shape = 'u8[512]{0}', space=smem, size = 0x200, scoped, tag = 'prefetched SMEM operand 1']
  %s0 = inlined_call_operand.hbm [shape: s32[2,2], index: 0, kind: input, shape index: {}]
  %s1 = inlined_call_operand.hbm [shape: s32[2], index: 1, kind: input, shape index: {}]
  %s2 = inlined_call_operand.hbm [shape: s32[1,1024], index: 2, kind: input, shape index: {}]
  %s3 = inlined_call_operand.hbm [shape: bf16[1024,128], index: 3, kind: input, shape index: {}]
  %s4 = inlined_call_operand.hbm [shape: bf16[512,128], index: 4, kind: input, shape index: {}]
  %s5 = inlined_call_operand.hbm [shape: bf16[128,128], index: 5, kind: input, shape index: {}]
  %s6 = inlined_call_operand.vmem [shape: f32[1,128], index: 6, kind: input, shape index: {}]
  %s7 = inlined_call_operand.hbm [shape: bf16[512,128], index: 7, kind: output, shape index: {}]
  %s8 = sld [smem:[#allocation0]]
  $region81: #{tpu_custom_call.1} parent=0
    _
  %s10 = ssub.s32 1, %s8
  %s11 = scalar_select 0, %s10, %s8
  %s13 = sshll.u32 %s0, 4
  %s14 = int_to_ptr.hbm [resolvable:$true] %s13
  %16 = dma.hbm_to_smem %s14, 32, [#allocation4], [#allocation3]
  %s18 = sshll.u32 %s1, 4
  %s19 = int_to_ptr.hbm [resolvable:$true] %s18
  %21 = dma.hbm_to_smem %s19, 16, [#allocation5], [#allocation3]
  %23 = dma.done [#allocation3], 48
  %24 = sfence
  $region1: #{tpu_custom_call.1} parent=0
    #allocation6 [shape = 'u8[4096]{0}', space=vmem, size = 0x1000, scoped, tag = 'input window, operand 2']
    #allocation7 [shape = 's32[2]{0}', space=sflag, size = 0x8, scoped, tag = 'scoped memory for tpu_custom_call.1']
    #allocation8 [shape = 's32[2]{0}', space=sflag, size = 0x8, scoped, tag = 'scoped memory for tpu_custom_call.1']
    #allocation9 [shape = 'u8[262144]{0}', space=vmem, size = 0x40000, scoped, tag = 'input window, operand 3']
    #allocation10 [shape = 's32[2]{0}', space=sflag, size = 0x8, scoped, tag = 'scoped memory for tpu_custom_call.1']
    #allocation11 [shape = 'u8[131072]{0}', space=vmem, size = 0x20000, scoped, tag = 'input window, operand 4']
    #allocation12 [shape = 'u8[32768]{0}', space=vmem, size = 0x8000, scoped, tag = 'input window, operand 5, single buffered']
    #allocation13 [shape = 's32[1]{0}', space=sflag, size = 0x4, scoped, tag = 'scoped memory for tpu_custom_call.1']
    #allocation14 [shape = 'u8[131072]{0}', space=vmem, size = 0x20000, scoped, tag = 'output window, operand 0']
    %25 = vsyncpa [#allocation7], 0
    %s26 = scalar_lea.sflag [#allocation7], 1
    %27 = vsyncpa %s26, 0
    %28 = vsyncpa [#allocation10], 0
    %s29 = scalar_lea.sflag [#allocation10], 1
    %30 = vsyncpa %s29, 0
    %31 = vsyncpa [#allocation13], 0
    %32 = vsyncpa [#allocation8], 0
    %s33 = scalar_lea.sflag [#allocation8], 1
    %34 = vsyncpa %s33, 0
    loop: start=0, step=1, limit=6
    $region2: #{tpu_custom_call.1} parent=1 // loop_pre_header
      _
    $region3: #{tpu_custom_call.1} parent=1 // loop_header
      %s36 = sphi 0, %s40
      %p37 = scmp.ge.s32.totalorder %s36, 6
      %s43 = sphi 0, %s55
      %s44 = sphi 0, %s51
      %s45 = sphi 0, %s43
      %s46 = sphi 0, %s44
      %s47 = sphi 0, %s45
      %s48 = sphi 0, %s46
      %s74 = sphi 0, %s76
      %s77 = sphi 0, %s74
      %s78 = sphi 0, %s77
      %s94 = sphi 0, %s78
      %s116 = sphi 0, %s118
      %s119 = sphi 0, %s116
      %s120 = sphi 0, %s119
      %s136 = sphi 0, %s120
      %s142 = sphi 0, %s144
      %s145 = sphi 0, %s142
      %s146 = sphi 0, %s145
      %s162 = sphi 0, %s146
      %s166 = sphi 0, %s166
      %s168 = sphi 0, %s166
      %s169 = sphi 0, %s168
      %s183 = sphi 0, %s169
      %s187 = sphi 0, %s187
      %s189 = sphi 0, %s187
      %s190 = sphi 0, %s189
      %s204 = sphi 0, %s190
      %s210 = sphi 0, %s212
      %s213 = sphi 0, %s210
      %s214 = sphi 0, %s213
      %s230 = sphi 0, %s214
    $region4: #{tpu_custom_call.1} parent=1 // loop_header_branch
      %39 = sbr.rel (%p37) target = $region8
    $region5: #{tpu_custom_call.1} parent=1 // loop_body
      %s41 = ssub.s32 %s36, 1
      %s42 = ssub.s32 %s36, 2
      %s49 = sadd.s32 1, %s44
      %p50 = scmp.ge.s32.totalorder %s49, 2
      %s51 = scalar_select %p50, 0, %s49
      %s52 = sadd.s32 1, %s43
      %s53 = scalar_select %p50, %s52, %s43
      %p54 = scmp.ge.s32.totalorder %s53, 2
      %s55 = scalar_select %p54, 0, %s53
      %s56 = sshra.s32 %s44, 7
      %s57 = sand.u32 %s44, 127
      %s58 = sadd.s32 %s56, %s43
      %s59 = smul.u32 %s58, 128
      %s60 = sshra.s32 %s44, 7
      %s61 = sand.u32 %s44, 127
      %s62 = sadd.s32 %s59, %s61
      %s63 = sld [smem:[#allocation4 + %s62]]
      %s64 = sshra.s32 %s51, 7
      %s65 = sand.u32 %s51, 127
      %s66 = sadd.s32 %s64, %s55
      %s67 = smul.u32 %s66, 128
      %s68 = sshra.s32 %s51, 7
      %s69 = sand.u32 %s51, 127
      %s70 = sadd.s32 %s67, %s69
      %s71 = sld [smem:[#allocation4 + %s70]]
      %s72 = ssub.s32 %s63, %s71
      %p73 = scmp.eq.s32.totalorder %s72, 0
      %s75 = sadd.s32 %s74, 1
      %s76 = scalar_select %p73, %s74, %s75
      %p79 = pneg %p73
      %p80 = scmp.eq.s32.totalorder %s36, 3
      %p81 = por %p79, %p80
      %p82 = scmp.ne.s32.totalorder %s74, %s77
      %p83 = scmp.eq.s32.totalorder %s36, 0
      %p84 = por %p82, %p83
      %p85 = scmp.ne.s32.totalorder %s74, %s77
      %p86 = scmp.eq.s32.totalorder %s41, 3
      %p87 = por %p85, %p86
      %p88 = scmp.ne.s32.totalorder %s77, %s78
      %p89 = scmp.eq.s32.totalorder %s41, 0
      %p90 = por %p88, %p89
      %p91 = scmp.ne.s32.totalorder %s77, %s78
      %p92 = scmp.eq.s32.totalorder %s42, 3
      %p93 = por %p91, %p92
      %p95 = scmp.ne.s32.totalorder %s78, %s94
      %p96 = scmp.eq.s32.totalorder %s42, 0
      %p97 = por %p95, %p96
      %s98 = sshra.s32 %s44, 7
      %s99 = sand.u32 %s44, 127
      %s100 = sadd.s32 %s98, %s43
      %s101 = smul.u32 %s100, 128
      %s102 = sshra.s32 %s44, 7
      %s103 = sand.u32 %s44, 127
      %s104 = sadd.s32 %s101, %s103
      %s105 = sld [smem:[#allocation4 + %s104]]
      %s106 = sshra.s32 %s51, 7
      %s107 = sand.u32 %s51, 127
      %s108 = sadd.s32 %s106, %s55
      %s109 = smul.u32 %s108, 128
      %s110 = sshra.s32 %s51, 7
      %s111 = sand.u32 %s51, 127
      %s112 = sadd.s32 %s109, %s111
      %s113 = sld [smem:[#allocation4 + %s112]]
      %s114 = ssub.s32 %s105, %s113
      %p115 = scmp.eq.s32.totalorder %s114, 0
      %s117 = sadd.s32 %s116, 1
      %s118 = scalar_select %p115, %s116, %s117
      %p121 = pneg %p115
      %p122 = scmp.eq.s32.totalorder %s36, 3
      %p123 = por %p121, %p122
      %p124 = scmp.ne.s32.totalorder %s116, %s119
      %p125 = scmp.eq.s32.totalorder %s36, 0
      %p126 = por %p124, %p125
      %p127 = scmp.ne.s32.totalorder %s116, %s119
      %p128 = scmp.eq.s32.totalorder %s41, 3
      %p129 = por %p127, %p128
      %p130 = scmp.ne.s32.totalorder %s119, %s120
      %p131 = scmp.eq.s32.totalorder %s41, 0
      %p132 = por %p130, %p131
      %p133 = scmp.ne.s32.totalorder %s119, %s120
      %p134 = scmp.eq.s32.totalorder %s42, 3
      %p135 = por %p133, %p134
      %p137 = scmp.ne.s32.totalorder %s120, %s136
      %p138 = scmp.eq.s32.totalorder %s42, 0
      %p139 = por %p137, %p138
      %s140 = ssub.s32 %s43, %s55
      %p141 = scmp.eq.s32.totalorder %s140, 0
      %s143 = sadd.s32 %s142, 1
      %s144 = scalar_select %p141, %s142, %s143
      %p147 = pneg %p141
      %p148 = scmp.eq.s32.totalorder %s36, 3
      %p149 = por %p147, %p148
      %p150 = scmp.ne.s32.totalorder %s142, %s145
      %p151 = scmp.eq.s32.totalorder %s36, 0
      %p152 = por %p150, %p151
      %p153 = scmp.ne.s32.totalorder %s142, %s145
      %p154 = scmp.eq.s32.totalorder %s41, 3
      %p155 = por %p153, %p154
      %p156 = scmp.ne.s32.totalorder %s145, %s146
      %p157 = scmp.eq.s32.totalorder %s41, 0
      %p158 = por %p156, %p157
      %p159 = scmp.ne.s32.totalorder %s145, %s146
      %p160 = scmp.eq.s32.totalorder %s42, 3
      %p161 = por %p159, %p160
      %p163 = scmp.ne.s32.totalorder %s146, %s162
      %p164 = scmp.eq.s32.totalorder %s42, 0
      %p165 = por %p163, %p164
      %s167 = sadd.s32 %s166, 1
      %p170 = scmp.eq.s32.totalorder %s36, 3
      %p171 = scmp.ne.s32.totalorder %s166, %s168
      %p172 = scmp.eq.s32.totalorder %s36, 0
      %p173 = por %p171, %p172
      %p174 = scmp.ne.s32.totalorder %s166, %s168
      %p175 = scmp.eq.s32.totalorder %s41, 3
      %p176 = por %p174, %p175
      %p177 = scmp.ne.s32.totalorder %s168, %s169
      %p178 = scmp.eq.s32.totalorder %s41, 0
      %p179 = por %p177, %p178
      %p180 = scmp.ne.s32.totalorder %s168, %s169
      %p181 = scmp.eq.s32.totalorder %s42, 3
      %p182 = por %p180, %p181
      %p184 = scmp.ne.s32.totalorder %s169, %s183
      %p185 = scmp.eq.s32.totalorder %s42, 0
      %p186 = por %p184, %p185
      %s188 = sadd.s32 %s187, 1
      %p191 = scmp.eq.s32.totalorder %s36, 3
      %p192 = scmp.ne.s32.totalorder %s187, %s189
      %p193 = scmp.eq.s32.totalorder %s36, 0
      %p194 = por %p192, %p193
      %p195 = scmp.ne.s32.totalorder %s187, %s189
      %p196 = scmp.eq.s32.totalorder %s41, 3
      %p197 = por %p195, %p196
      %p198 = scmp.ne.s32.totalorder %s189, %s190
      %p199 = scmp.eq.s32.totalorder %s41, 0
      %p200 = por %p198, %p199
      %p201 = scmp.ne.s32.totalorder %s189, %s190
      %p202 = scmp.eq.s32.totalorder %s42, 3
      %p203 = por %p201, %p202
      %p205 = scmp.ne.s32.totalorder %s190, %s204
      %p206 = scmp.eq.s32.totalorder %s42, 0
      %p207 = por %p205, %p206
      %s208 = ssub.s32 %s43, %s55
      %p209 = scmp.eq.s32.totalorder %s208, 0
      %s211 = sadd.s32 %s210, 1
      %s212 = scalar_select %p209, %s210, %s211
      %p215 = pneg %p209
      %p216 = scmp.eq.s32.totalorder %s36, 3
      %p217 = por %p215, %p216
      %p218 = scmp.ne.s32.totalorder %s210, %s213
      %p219 = scmp.eq.s32.totalorder %s36, 0
      %p220 = por %p218, %p219
      %p221 = scmp.ne.s32.totalorder %s210, %s213
      %p222 = scmp.eq.s32.totalorder %s41, 3
      %p223 = por %p221, %p222
      %p224 = scmp.ne.s32.totalorder %s213, %s214
      %p225 = scmp.eq.s32.totalorder %s41, 0
      %p226 = por %p224, %p225
      %p227 = scmp.ne.s32.totalorder %s213, %s214
      %p228 = scmp.eq.s32.totalorder %s42, 3
      %p229 = por %p227, %p228
      %p231 = scmp.ne.s32.totalorder %s214, %s230
      %p232 = scmp.eq.s32.totalorder %s42, 0
      %p233 = por %p231, %p232
      %p234 = scmp.le.s32.totalorder 1, %s36
      %p235 = scmp.lt.s32.totalorder %s36, 5
      %p236 = pnand %p234, %p235
      %p237 = pneg %p236
      // Predicated region
      $region9: #{tpu_custom_call.1} parent=5 // pred_check
        _
      $region10: #{tpu_custom_call.1} parent=5 // pred_check_branch
        %239 = sbr.rel (%p236) target = $region12
      $region11: #{tpu_custom_call.1} parent=5 // pred_region
        %s240 = ssub.s32 %s36, 1
        // Predicated region
        $region13: #{tpu_custom_call.1} parent=11 // pred_check
          %p241 = pneg %p179
        $region14: #{tpu_custom_call.1} parent=11 // pred_check_branch
          %243 = sbr.rel (%p241) target = $region16
        $region15: #{tpu_custom_call.1} parent=11 // pred_region
          %245 = vsyncadd [#allocation13], 0
          %s246 = sshll.u32 %s5, 4
          %s247 = int_to_ptr.hbm [resolvable:$true] %s246
          %s248 = sshll.u32 [#allocation12], 4
          %s249 = int_to_ptr.vmem [resolvable:$true] %s248
          %254 = dma.hbm_to_vmem [thread:$0]  %s247, 1024, %s249, [#allocation13], 64, 64, 4
        $region16: #{tpu_custom_call.1} parent=11 // pred_fallthru
          _
        // Predicated region
        $region17: #{tpu_custom_call.1} parent=11 // pred_check
          %p255 = pneg %p200
        $region18: #{tpu_custom_call.1} parent=11 // pred_check_branch
          %257 = sbr.rel (%p255) target = $region20
        $region19: #{tpu_custom_call.1} parent=11 // pred_region
          _
        $region20: #{tpu_custom_call.1} parent=11 // pred_fallthru
          _
      $region12: #{tpu_custom_call.1} parent=5 // pred_fallthru
        _
      %p258 = scmp.lt.s32.totalorder %s36, 4
      // Predicated region
      $region21: #{tpu_custom_call.1} parent=5 // pred_check
        %p259 = pneg %p258
      $region22: #{tpu_custom_call.1} parent=5 // pred_check_branch
        %261 = sbr.rel (%p259) target = $region24
      $region23: #{tpu_custom_call.1} parent=5 // pred_region
        // Predicated region
        $region25: #{tpu_custom_call.1} parent=23 // pred_check
          %p262 = pneg %p84
        $region26: #{tpu_custom_call.1} parent=23 // pred_check_branch
          %264 = sbr.rel (%p262) target = $region28
        $region27: #{tpu_custom_call.1} parent=23 // pred_region
          %s265 = sand.u32 %s74, 1
          %s266 = scalar_lea.sflag [#allocation7], %s265
          %s267 = sand.u32 %s74, 1
          %s268 = smul.addr %s267, 4
          %s269 = scalar_lea.vmem [#allocation6], %s268
          %s270 = sshra.s32 %s44, 7
          %s271 = sand.u32 %s44, 127
          %s272 = sadd.s32 %s270, %s43
          %s273 = smul.u32 %s272, 128
          %s274 = sshra.s32 %s44, 7
          %s275 = sand.u32 %s44, 127
          %s276 = sadd.s32 %s273, %s275
          %s277 = sld [smem:[#allocation4 + %s276]]
          %s278 = smul.u32 4, %s277
          %280 = vsyncadd %s266, 0
          %s281 = scalar_lea.hbm %s2, %s278
          %s283 = sshll.u32 %s281, 4
          %s284 = int_to_ptr.hbm [resolvable:$true] %s283
          %s285 = sshll.u32 %s269, 4
          %s286 = int_to_ptr.vmem [resolvable:$true] %s285
          %288 = dma.hbm_to_vmem [thread:$0]  %s284, 64, %s286, %s266
        $region28: #{tpu_custom_call.1} parent=23 // pred_fallthru
          _
        // Predicated region
        $region29: #{tpu_custom_call.1} parent=23 // pred_check
          %p289 = pneg %p126
        $region30: #{tpu_custom_call.1} parent=23 // pred_check_branch
          %291 = sbr.rel (%p289) target = $region32
        $region31: #{tpu_custom_call.1} parent=23 // pred_region
          %s292 = sand.u32 %s36, 1
          %s293 = scalar_lea.sflag [#allocation10], %s292
          %s294 = sand.u32 %s116, 1
          %s295 = smul.addr %s294, 256
          %s296 = scalar_lea.vmem [#allocation9], %s295
          %s297 = sshra.s32 %s44, 7
          %s298 = sand.u32 %s44, 127
          %s299 = sadd.s32 %s297, %s43
          %s300 = smul.u32 %s299, 128
          %s301 = sshra.s32 %s44, 7
          %s302 = sand.u32 %s44, 127
          %s303 = sadd.s32 %s300, %s302
          %s304 = sld [smem:[#allocation4 + %s303]]
          %s305 = smul.u32 64, %s304
          %307 = vsyncadd %s293, 0
          %s308 = smul.addr %s305, 4
          %s309 = scalar_lea.hbm %s3, %s308
          %s310 = sshll.u32 %s309, 4
          %s311 = int_to_ptr.hbm [resolvable:$true] %s310
          %s312 = sshll.u32 %s296, 4
          %s313 = int_to_ptr.vmem [resolvable:$true] %s312
          %318 = dma.hbm_to_vmem [thread:$0]  %s311, 4096, %s313, %s293, 64, 64, 4
        $region32: #{tpu_custom_call.1} parent=23 // pred_fallthru
          _
        // Predicated region
        $region33: #{tpu_custom_call.1} parent=23 // pred_check
          %p319 = pneg %p152
        $region34: #{tpu_custom_call.1} parent=23 // pred_check_branch
          %321 = sbr.rel (%p319) target = $region36
        $region35: #{tpu_custom_call.1} parent=23 // pred_region
          %s322 = sand.u32 %s36, 1
          %s323 = scalar_lea.sflag [#allocation10], %s322
          %s324 = sand.u32 %s142, 1
          %s325 = smul.addr %s324, 128
          %s326 = scalar_lea.vmem [#allocation11], %s325
          %s327 = smul.u32 32, %s43
          %329 = vsyncadd %s323, 0
          %s330 = smul.addr %s327, 4
          %s331 = scalar_lea.hbm %s4, %s330
          %s332 = sshll.u32 %s331, 4
          %s333 = int_to_ptr.hbm [resolvable:$true] %s332
          %s334 = sshll.u32 %s326, 4
          %s335 = int_to_ptr.vmem [resolvable:$true] %s334
          %340 = dma.hbm_to_vmem [thread:$0]  %s333, 2048, %s335, %s323, 64, 64, 4
        $region36: #{tpu_custom_call.1} parent=23 // pred_fallthru
          _
      $region24: #{tpu_custom_call.1} parent=5 // pred_fallthru
        _
      %p341 = scmp.le.s32.totalorder 1, %s36
      %p342 = scmp.lt.s32.totalorder %s36, 5
      %p343 = pnand %p341, %p342
      %p344 = pneg %p343
      // Predicated region
      $region37: #{tpu_custom_call.1} parent=5 // pred_check
        _
      $region38: #{tpu_custom_call.1} parent=5 // pred_check_branch
        %346 = sbr.rel (%p343) target = $region40
      $region39: #{tpu_custom_call.1} parent=5 // pred_region
        %s347 = ssub.s32 %s36, 1
        %s348 = sand.u32 %s77, 1
        %s349 = scalar_lea.sflag [#allocation7], %s348
        %s350 = sand.u32 %s77, 1
        %s351 = smul.addr %s350, 4
        %s352 = scalar_lea.vmem [#allocation6], %s351
        // Predicated region
        $region41: #{tpu_custom_call.1} parent=39 // pred_check
          %p353 = pneg %p90
        $region42: #{tpu_custom_call.1} parent=39 // pred_check_branch
          %355 = sbr.rel (%p353) target = $region44
        $region43: #{tpu_custom_call.1} parent=39 // pred_region
          %357 = dma.done %s349, 64
        $region44: #{tpu_custom_call.1} parent=39 // pred_fallthru
          _
        %s358 = sand.u32 %s41, 1
        %s359 = scalar_lea.sflag [#allocation10], %s358
        %s360 = sand.u32 %s119, 1
        %s361 = smul.addr %s360, 256
        %s362 = scalar_lea.vmem [#allocation9], %s361
        // Predicated region
        $region45: #{tpu_custom_call.1} parent=39 // pred_check
          %p363 = pneg %p132
        $region46: #{tpu_custom_call.1} parent=39 // pred_check_branch
          %365 = sbr.rel (%p363) target = $region48
        $region47: #{tpu_custom_call.1} parent=39 // pred_region
          %367 = dma.done %s359, 4096
        $region48: #{tpu_custom_call.1} parent=39 // pred_fallthru
          _
        %s368 = sand.u32 %s41, 1
        %s369 = scalar_lea.sflag [#allocation10], %s368
        %s370 = sand.u32 %s145, 1
        %s371 = smul.addr %s370, 128
        %s372 = scalar_lea.vmem [#allocation11], %s371
        // Predicated region
        $region49: #{tpu_custom_call.1} parent=39 // pred_check
          %p373 = pneg %p158
        $region50: #{tpu_custom_call.1} parent=39 // pred_check_branch
          %375 = sbr.rel (%p373) target = $region52
        $region51: #{tpu_custom_call.1} parent=39 // pred_region
          %377 = dma.done %s369, 2048
        $region52: #{tpu_custom_call.1} parent=39 // pred_fallthru
          _
        // Predicated region
        $region53: #{tpu_custom_call.1} parent=39 // pred_check
          %p378 = pneg %p179
        $region54: #{tpu_custom_call.1} parent=39 // pred_check_branch
          %380 = sbr.rel (%p378) target = $region56
        $region55: #{tpu_custom_call.1} parent=39 // pred_region
          %382 = dma.done [#allocation13], 1024
        $region56: #{tpu_custom_call.1} parent=39 // pred_fallthru
          _
        %s383 = sand.u32 %s77, 1
        %s384 = scalar_lea.sflag [#allocation7], %s383
        %s385 = sand.u32 %s77, 1
        %s386 = smul.addr %s385, 4
        %s387 = scalar_lea.vmem [#allocation6], %s386
        %p388 = pneg %p90
        %p389 = pneg %p87
        %s390 = sand.u32 %s41, 1
        %s391 = scalar_lea.sflag [#allocation10], %s390
        %s392 = sand.u32 %s119, 1
        %s393 = smul.addr %s392, 256
        %s394 = scalar_lea.vmem [#allocation9], %s393
        %p395 = pneg %p132
        %p396 = pneg %p129
        %s397 = sand.u32 %s41, 1
        %s398 = scalar_lea.sflag [#allocation10], %s397
        %s399 = sand.u32 %s145, 1
        %s400 = smul.addr %s399, 128
        %s401 = scalar_lea.vmem [#allocation11], %s400
        %p402 = pneg %p158
        %p403 = pneg %p155
        %p404 = pneg %p179
        %p405 = pneg %p176
        %p406 = pneg %p200
        %p407 = pneg %p197
        %p408 = pneg %p226
        %p409 = pneg %p223
        %s410 = sand.u32 %s213, 1
        %s411 = scalar_lea.sflag [#allocation8], %s410
        %s412 = sand.u32 %s213, 1
        %s413 = smul.addr %s412, 128
        %s414 = scalar_lea.vmem [#allocation14], %s413
        %s415 = sshra.s32 %s46, 7
        %s416 = sand.u32 %s46, 127
        %s417 = sadd.s32 %s415, %s45
        %s418 = smul.u32 %s417, 128
        %s419 = sshra.s32 %s46, 7
        %s420 = sand.u32 %s46, 127
        %s421 = sadd.s32 %s418, %s420
        %s422 = sld [smem:[#allocation4 + %s421]]
        %s423 = smul.u32 4, %s422
        %s424 = sshra.s32 %s46, 7
        %s425 = sand.u32 %s46, 127
        %s426 = sadd.s32 %s424, %s45
        %s427 = smul.u32 %s426, 128
        %s428 = sshra.s32 %s46, 7
        %s429 = sand.u32 %s46, 127
        %s430 = sadd.s32 %s427, %s429
        %s431 = sld [smem:[#allocation4 + %s430]]
        %s432 = smul.u32 64, %s431
        %s433 = smul.u32 32, %s45
        %s434 = smul.u32 32, %s45
        %s435 = smul.u32 %s45, 256
        %p436 = scmp.eq.s32.totalorder %s46, 0
        // Predicated region
        $region57: #{tpu_custom_call.1} parent=39 // pred_check
          %p437 = pneg %p436
        $region58: #{tpu_custom_call.1} parent=39 // pred_check_branch
          %439 = sbr.rel (%p437) target = $region60
        $region59: #{tpu_custom_call.1} parent=39 // pred_region
          %440 = vst [vmem:[#allocation2] sm:$0xff] 0.0
          %441 = vst [vmem:[#allocation2 + $0x8] sm:$0xff] 0.0
          %442 = vst [vmem:[#allocation2 + $0x10] sm:$0xff] 0.0
          %443 = vst [vmem:[#allocation2 + $0x18] sm:$0xff] 0.0
          %444 = vst [vmem:[#allocation2 + $0x20] sm:$0xff] 0.0
          %445 = vst [vmem:[#allocation2 + $0x28] sm:$0xff] 0.0
          %446 = vst [vmem:[#allocation2 + $0x30] sm:$0xff] 0.0
          %447 = vst [vmem:[#allocation2 + $0x38] sm:$0xff] 0.0
          %448 = vst [vmem:[#allocation2 + $0x40] sm:$0xff] 0.0
          %449 = vst [vmem:[#allocation2 + $0x48] sm:$0xff] 0.0
          %450 = vst [vmem:[#allocation2 + $0x50] sm:$0xff] 0.0
          %451 = vst [vmem:[#allocation2 + $0x58] sm:$0xff] 0.0
          %452 = vst [vmem:[#allocation2 + $0x60] sm:$0xff] 0.0
          %453 = vst [vmem:[#allocation2 + $0x68] sm:$0xff] 0.0
          %454 = vst [vmem:[#allocation2 + $0x70] sm:$0xff] 0.0
          %455 = vst [vmem:[#allocation2 + $0x78] sm:$0xff] 0.0
          %456 = vst [vmem:[#allocation2 + $0x80] sm:$0xff] 0.0
          %457 = vst [vmem:[#allocation2 + $0x88] sm:$0xff] 0.0
          %458 = vst [vmem:[#allocation2 + $0x90] sm:$0xff] 0.0
          %459 = vst [vmem:[#allocation2 + $0x98] sm:$0xff] 0.0
          %460 = vst [vmem:[#allocation2 + $0xa0] sm:$0xff] 0.0
          %461 = vst [vmem:[#allocation2 + $0xa8] sm:$0xff] 0.0
          %462 = vst [vmem:[#allocation2 + $0xb0] sm:$0xff] 0.0
          %463 = vst [vmem:[#allocation2 + $0xb8] sm:$0xff] 0.0
          %464 = vst [vmem:[#allocation2 + $0xc0] sm:$0xff] 0.0
          %465 = vst [vmem:[#allocation2 + $0xc8] sm:$0xff] 0.0
          %466 = vst [vmem:[#allocation2 + $0xd0] sm:$0xff] 0.0
          %467 = vst [vmem:[#allocation2 + $0xd8] sm:$0xff] 0.0
          %468 = vst [vmem:[#allocation2 + $0xe0] sm:$0xff] 0.0
          %469 = vst [vmem:[#allocation2 + $0xe8] sm:$0xff] 0.0
          %470 = vst [vmem:[#allocation2 + $0xf0] sm:$0xff] 0.0
          %471 = vst [vmem:[#allocation2 + $0xf8] sm:$0xff] 0.0
        $region60: #{tpu_custom_call.1} parent=39 // pred_fallthru
          _
        %s472 = sld [smem:[#allocation5 + %s45]]
        %p473 = scmp.lt.s32.totalorder %s46, %s472
        // Predicated region
        $region61: #{tpu_custom_call.1} parent=39 // pred_check
          %p474 = pneg %p473
        $region62: #{tpu_custom_call.1} parent=39 // pred_check_branch
          %476 = sbr.rel (%p474) target = $region64
        $region63: #{tpu_custom_call.1} parent=39 // pred_region
          %v477 = vlaneseq
          %v478 = vshrl.u32 %v477, 7
          %v479 = vadd.s32 %v478, 8
          %v480 = vadd.s32 %v478, 16
          %v481 = vadd.s32 %v478, 24
          %v482 = vadd.s32 %v478, 32
          %v483 = vadd.s32 %v478, 40
          %v484 = vadd.s32 %v478, 48
          %v485 = vadd.s32 %v478, 56
          %v486 = vadd.s32 %v478, 64
          %v487 = vadd.s32 %v478, 72
          %v488 = vadd.s32 %v478, 80
          %v489 = vadd.s32 %v478, 88
          %v490 = vadd.s32 %v478, 96
          %v491 = vadd.s32 %v478, 104
          %v492 = vadd.s32 %v478, 112
          %v493 = vadd.s32 %v478, 120
          %v494 = vadd.s32 %v478, 128
          %v495 = vadd.s32 %v478, 136
          %v496 = vadd.s32 %v478, 144
          %v497 = vadd.s32 %v478, 152
          %v498 = vadd.s32 %v478, 160
          %v499 = vadd.s32 %v478, 168
          %v500 = vadd.s32 %v478, 176
          %v501 = vadd.s32 %v478, 184
          %v502 = vadd.s32 %v478, 192
          %v503 = vadd.s32 %v478, 200
          %v504 = vadd.s32 %v478, 208
          %v505 = vadd.s32 %v478, 216
          %v506 = vadd.s32 %v478, 224
          %v507 = vadd.s32 %v478, 232
          %v508 = vadd.s32 %v478, 240
          %v509 = vadd.s32 %v478, 248
          %v510 = vstv %s435
          %v511 = vadd.s32 %v510, %v478
          %v512 = vadd.s32 %v510, %v479
          %v513 = vadd.s32 %v510, %v480
          %v514 = vadd.s32 %v510, %v481
          %v515 = vadd.s32 %v510, %v482
          %v516 = vadd.s32 %v510, %v483
          %v517 = vadd.s32 %v510, %v484
          %v518 = vadd.s32 %v510, %v485
          %v519 = vadd.s32 %v510, %v486
          %v520 = vadd.s32 %v510, %v487
          %v521 = vadd.s32 %v510, %v488
          %v522 = vadd.s32 %v510, %v489
          %v523 = vadd.s32 %v510, %v490
          %v524 = vadd.s32 %v510, %v491
          %v525 = vadd.s32 %v510, %v492
          %v526 = vadd.s32 %v510, %v493
          %v527 = vadd.s32 %v510, %v494
          %v528 = vadd.s32 %v510, %v495
          %v529 = vadd.s32 %v510, %v496
          %v530 = vadd.s32 %v510, %v497
          %v531 = vadd.s32 %v510, %v498
          %v532 = vadd.s32 %v510, %v499
          %v533 = vadd.s32 %v510, %v500
          %v534 = vadd.s32 %v510, %v501
          %v535 = vadd.s32 %v510, %v502
          %v536 = vadd.s32 %v510, %v503
          %v537 = vadd.s32 %v510, %v504
          %v538 = vadd.s32 %v510, %v505
          %v539 = vadd.s32 %v510, %v506
          %v540 = vadd.s32 %v510, %v507
          %v541 = vadd.s32 %v510, %v508
          %v542 = vadd.s32 %v510, %v509
          %v543 = vld [vmem:[%s352] sm:$0xf]
          %v544 = vperm.slane %v543, 0
          %v545 = vperm.slane %v543, 1
          %v546 = vperm.slane %v543, 2
          %v547 = vperm.slane %v543, 3
          %vm548 = vcmp.eq.s32.totalorder %v544, %v511
          %vm549 = vcmp.eq.s32.totalorder %v545, %v511
          %vm550 = vcmp.eq.s32.totalorder %v546, %v511
          %vm551 = vcmp.eq.s32.totalorder %v547, %v511
          %vm552 = vcmp.eq.s32.totalorder %v544, %v512
          %vm553 = vcmp.eq.s32.totalorder %v545, %v512
          %vm554 = vcmp.eq.s32.totalorder %v546, %v512
          %vm555 = vcmp.eq.s32.totalorder %v547, %v512
          %vm556 = vcmp.eq.s32.totalorder %v544, %v513
          %vm557 = vcmp.eq.s32.totalorder %v545, %v513
          %vm558 = vcmp.eq.s32.totalorder %v546, %v513
          %vm559 = vcmp.eq.s32.totalorder %v547, %v513
          %vm560 = vcmp.eq.s32.totalorder %v544, %v514
          %vm561 = vcmp.eq.s32.totalorder %v545, %v514
          %vm562 = vcmp.eq.s32.totalorder %v546, %v514
          %vm563 = vcmp.eq.s32.totalorder %v547, %v514
          %vm564 = vcmp.eq.s32.totalorder %v544, %v515
          %vm565 = vcmp.eq.s32.totalorder %v545, %v515
          %vm566 = vcmp.eq.s32.totalorder %v546, %v515
          %vm567 = vcmp.eq.s32.totalorder %v547, %v515
          %vm568 = vcmp.eq.s32.totalorder %v544, %v516
          %vm569 = vcmp.eq.s32.totalorder %v545, %v516
          %vm570 = vcmp.eq.s32.totalorder %v546, %v516
          %vm571 = vcmp.eq.s32.totalorder %v547, %v516
          %vm572 = vcmp.eq.s32.totalorder %v544, %v517
          %vm573 = vcmp.eq.s32.totalorder %v545, %v517
          %vm574 = vcmp.eq.s32.totalorder %v546, %v517
          %vm575 = vcmp.eq.s32.totalorder %v547, %v517
          %vm576 = vcmp.eq.s32.totalorder %v544, %v518
          %vm577 = vcmp.eq.s32.totalorder %v545, %v518
          %vm578 = vcmp.eq.s32.totalorder %v546, %v518
          %vm579 = vcmp.eq.s32.totalorder %v547, %v518
          %vm580 = vcmp.eq.s32.totalorder %v544, %v519
          %vm581 = vcmp.eq.s32.totalorder %v545, %v519
          %vm582 = vcmp.eq.s32.totalorder %v546, %v519
          %vm583 = vcmp.eq.s32.totalorder %v547, %v519
          %vm584 = vcmp.eq.s32.totalorder %v544, %v520
          %vm585 = vcmp.eq.s32.totalorder %v545, %v520
          %vm586 = vcmp.eq.s32.totalorder %v546, %v520
          %vm587 = vcmp.eq.s32.totalorder %v547, %v520
          %vm588 = vcmp.eq.s32.totalorder %v544, %v521
          %vm589 = vcmp.eq.s32.totalorder %v545, %v521
          %vm590 = vcmp.eq.s32.totalorder %v546, %v521
          %vm591 = vcmp.eq.s32.totalorder %v547, %v521
          %vm592 = vcmp.eq.s32.totalorder %v544, %v522
          %vm593 = vcmp.eq.s32.totalorder %v545, %v522
          %vm594 = vcmp.eq.s32.totalorder %v546, %v522
          %vm595 = vcmp.eq.s32.totalorder %v547, %v522
          %vm596 = vcmp.eq.s32.totalorder %v544, %v523
          %vm597 = vcmp.eq.s32.totalorder %v545, %v523
          %vm598 = vcmp.eq.s32.totalorder %v546, %v523
          %vm599 = vcmp.eq.s32.totalorder %v547, %v523
          %vm600 = vcmp.eq.s32.totalorder %v544, %v524
          %vm601 = vcmp.eq.s32.totalorder %v545, %v524
          %vm602 = vcmp.eq.s32.totalorder %v546, %v524
          %vm603 = vcmp.eq.s32.totalorder %v547, %v524
          %vm604 = vcmp.eq.s32.totalorder %v544, %v525
          %vm605 = vcmp.eq.s32.totalorder %v545, %v525
          %vm606 = vcmp.eq.s32.totalorder %v546, %v525
          %vm607 = vcmp.eq.s32.totalorder %v547, %v525
          %vm608 = vcmp.eq.s32.totalorder %v544, %v526
          %vm609 = vcmp.eq.s32.totalorder %v545, %v526
          %vm610 = vcmp.eq.s32.totalorder %v546, %v526
          %vm611 = vcmp.eq.s32.totalorder %v547, %v526
          %vm612 = vcmp.eq.s32.totalorder %v544, %v527
          %vm613 = vcmp.eq.s32.totalorder %v545, %v527
          %vm614 = vcmp.eq.s32.totalorder %v546, %v527
          %vm615 = vcmp.eq.s32.totalorder %v547, %v527
          %vm616 = vcmp.eq.s32.totalorder %v544, %v528
          %vm617 = vcmp.eq.s32.totalorder %v545, %v528
          %vm618 = vcmp.eq.s32.totalorder %v546, %v528
          %vm619 = vcmp.eq.s32.totalorder %v547, %v528
          %vm620 = vcmp.eq.s32.totalorder %v544, %v529
          %vm621 = vcmp.eq.s32.totalorder %v545, %v529
          %vm622 = vcmp.eq.s32.totalorder %v546, %v529
          %vm623 = vcmp.eq.s32.totalorder %v547, %v529
          %vm624 = vcmp.eq.s32.totalorder %v544, %v530
          %vm625 = vcmp.eq.s32.totalorder %v545, %v530
          %vm626 = vcmp.eq.s32.totalorder %v546, %v530
          %vm627 = vcmp.eq.s32.totalorder %v547, %v530
          %vm628 = vcmp.eq.s32.totalorder %v544, %v531
          %vm629 = vcmp.eq.s32.totalorder %v545, %v531
          %vm630 = vcmp.eq.s32.totalorder %v546, %v531
          %vm631 = vcmp.eq.s32.totalorder %v547, %v531
          %vm632 = vcmp.eq.s32.totalorder %v544, %v532
          %vm633 = vcmp.eq.s32.totalorder %v545, %v532
          %vm634 = vcmp.eq.s32.totalorder %v546, %v532
          %vm635 = vcmp.eq.s32.totalorder %v547, %v532
          %vm636 = vcmp.eq.s32.totalorder %v544, %v533
          %vm637 = vcmp.eq.s32.totalorder %v545, %v533
          %vm638 = vcmp.eq.s32.totalorder %v546, %v533
          %vm639 = vcmp.eq.s32.totalorder %v547, %v533
          %vm640 = vcmp.eq.s32.totalorder %v544, %v534
          %vm641 = vcmp.eq.s32.totalorder %v545, %v534
          %vm642 = vcmp.eq.s32.totalorder %v546, %v534
          %vm643 = vcmp.eq.s32.totalorder %v547, %v534
          %vm644 = vcmp.eq.s32.totalorder %v544, %v535
          %vm645 = vcmp.eq.s32.totalorder %v545, %v535
          %vm646 = vcmp.eq.s32.totalorder %v546, %v535
          %vm647 = vcmp.eq.s32.totalorder %v547, %v535
          %vm648 = vcmp.eq.s32.totalorder %v544, %v536
          %vm649 = vcmp.eq.s32.totalorder %v545, %v536
          %vm650 = vcmp.eq.s32.totalorder %v546, %v536
          %vm651 = vcmp.eq.s32.totalorder %v547, %v536
          %vm652 = vcmp.eq.s32.totalorder %v544, %v537
          %vm653 = vcmp.eq.s32.totalorder %v545, %v537
          %vm654 = vcmp.eq.s32.totalorder %v546, %v537
          %vm655 = vcmp.eq.s32.totalorder %v547, %v537
          %vm656 = vcmp.eq.s32.totalorder %v544, %v538
          %vm657 = vcmp.eq.s32.totalorder %v545, %v538
          %vm658 = vcmp.eq.s32.totalorder %v546, %v538
          %vm659 = vcmp.eq.s32.totalorder %v547, %v538
          %vm660 = vcmp.eq.s32.totalorder %v544, %v539
          %vm661 = vcmp.eq.s32.totalorder %v545, %v539
          %vm662 = vcmp.eq.s32.totalorder %v546, %v539
          %vm663 = vcmp.eq.s32.totalorder %v547, %v539
          %vm664 = vcmp.eq.s32.totalorder %v544, %v540
          %vm665 = vcmp.eq.s32.totalorder %v545, %v540
          %vm666 = vcmp.eq.s32.totalorder %v546, %v540
          %vm667 = vcmp.eq.s32.totalorder %v547, %v540
          %vm668 = vcmp.eq.s32.totalorder %v544, %v541
          %vm669 = vcmp.eq.s32.totalorder %v545, %v541
          %vm670 = vcmp.eq.s32.totalorder %v546, %v541
          %vm671 = vcmp.eq.s32.totalorder %v547, %v541
          %vm672 = vcmp.eq.s32.totalorder %v544, %v542
          %vm673 = vcmp.eq.s32.totalorder %v545, %v542
          %vm674 = vcmp.eq.s32.totalorder %v546, %v542
          %vm675 = vcmp.eq.s32.totalorder %v547, %v542
          %v676 = vsel %vm548, 1, 0
          %v677 = vsel %vm549, 1, 0
          %v678 = vsel %vm550, 1, 0
          %v679 = vsel %vm551, 1, 0
          %v680 = vsel %vm552, 1, 0
          %v681 = vsel %vm553, 1, 0
          %v682 = vsel %vm554, 1, 0
          %v683 = vsel %vm555, 1, 0
          %v684 = vsel %vm556, 1, 0
          %v685 = vsel %vm557, 1, 0
          %v686 = vsel %vm558, 1, 0
          %v687 = vsel %vm559, 1, 0
          %v688 = vsel %vm560, 1, 0
          %v689 = vsel %vm561, 1, 0
          %v690 = vsel %vm562, 1, 0
          %v691 = vsel %vm563, 1, 0
          %v692 = vsel %vm564, 1, 0
          %v693 = vsel %vm565, 1, 0
          %v694 = vsel %vm566, 1, 0
          %v695 = vsel %vm567, 1, 0
          %v696 = vsel %vm568, 1, 0
          %v697 = vsel %vm569, 1, 0
          %v698 = vsel %vm570, 1, 0
          %v699 = vsel %vm571, 1, 0
          %v700 = vsel %vm572, 1, 0
          %v701 = vsel %vm573, 1, 0
          %v702 = vsel %vm574, 1, 0
          %v703 = vsel %vm575, 1, 0
          %v704 = vsel %vm576, 1, 0
          %v705 = vsel %vm577, 1, 0
          %v706 = vsel %vm578, 1, 0
          %v707 = vsel %vm579, 1, 0
          %v708 = vsel %vm580, 1, 0
          %v709 = vsel %vm581, 1, 0
          %v710 = vsel %vm582, 1, 0
          %v711 = vsel %vm583, 1, 0
          %v712 = vsel %vm584, 1, 0
          %v713 = vsel %vm585, 1, 0
          %v714 = vsel %vm586, 1, 0
          %v715 = vsel %vm587, 1, 0
          %v716 = vsel %vm588, 1, 0
          %v717 = vsel %vm589, 1, 0
          %v718 = vsel %vm590, 1, 0
          %v719 = vsel %vm591, 1, 0
          %v720 = vsel %vm592, 1, 0
          %v721 = vsel %vm593, 1, 0
          %v722 = vsel %vm594, 1, 0
          %v723 = vsel %vm595, 1, 0
          %v724 = vsel %vm596, 1, 0
          %v725 = vsel %vm597, 1, 0
          %v726 = vsel %vm598, 1, 0
          %v727 = vsel %vm599, 1, 0
          %v728 = vsel %vm600, 1, 0
          %v729 = vsel %vm601, 1, 0
          %v730 = vsel %vm602, 1, 0
          %v731 = vsel %vm603, 1, 0
          %v732 = vsel %vm604, 1, 0
          %v733 = vsel %vm605, 1, 0
          %v734 = vsel %vm606, 1, 0
          %v735 = vsel %vm607, 1, 0
          %v736 = vsel %vm608, 1, 0
          %v737 = vsel %vm609, 1, 0
          %v738 = vsel %vm610, 1, 0
          %v739 = vsel %vm611, 1, 0
          %v740 = vsel %vm612, 1, 0
          %v741 = vsel %vm613, 1, 0
          %v742 = vsel %vm614, 1, 0
          %v743 = vsel %vm615, 1, 0
          %v744 = vsel %vm616, 1, 0
          %v745 = vsel %vm617, 1, 0
          %v746 = vsel %vm618, 1, 0
          %v747 = vsel %vm619, 1, 0
          %v748 = vsel %vm620, 1, 0
          %v749 = vsel %vm621, 1, 0
          %v750 = vsel %vm622, 1, 0
          %v751 = vsel %vm623, 1, 0
          %v752 = vsel %vm624, 1, 0
          %v753 = vsel %vm625, 1, 0
          %v754 = vsel %vm626, 1, 0
          %v755 = vsel %vm627, 1, 0
          %v756 = vsel %vm628, 1, 0
          %v757 = vsel %vm629, 1, 0
          %v758 = vsel %vm630, 1, 0
          %v759 = vsel %vm631, 1, 0
          %v760 = vsel %vm632, 1, 0
          %v761 = vsel %vm633, 1, 0
          %v762 = vsel %vm634, 1, 0
          %v763 = vsel %vm635, 1, 0
          %v764 = vsel %vm636, 1, 0
          %v765 = vsel %vm637, 1, 0
          %v766 = vsel %vm638, 1, 0
          %v767 = vsel %vm639, 1, 0
          %v768 = vsel %vm640, 1, 0
          %v769 = vsel %vm641, 1, 0
          %v770 = vsel %vm642, 1, 0
          %v771 = vsel %vm643, 1, 0
          %v772 = vsel %vm644, 1, 0
          %v773 = vsel %vm645, 1, 0
          %v774 = vsel %vm646, 1, 0
          %v775 = vsel %vm647, 1, 0
          %v776 = vsel %vm648, 1, 0
          %v777 = vsel %vm649, 1, 0
          %v778 = vsel %vm650, 1, 0
          %v779 = vsel %vm651, 1, 0
          %v780 = vsel %vm652, 1, 0
          %v781 = vsel %vm653, 1, 0
          %v782 = vsel %vm654, 1, 0
          %v783 = vsel %vm655, 1, 0
          %v784 = vsel %vm656, 1, 0
          %v785 = vsel %vm657, 1, 0
          %v786 = vsel %vm658, 1, 0
          %v787 = vsel %vm659, 1, 0
          %v788 = vsel %vm660, 1, 0
          %v789 = vsel %vm661, 1, 0
          %v790 = vsel %vm662, 1, 0
          %v791 = vsel %vm663, 1, 0
          %v792 = vsel %vm664, 1, 0
          %v793 = vsel %vm665, 1, 0
          %v794 = vsel %vm666, 1, 0
          %v795 = vsel %vm667, 1, 0
          %v796 = vsel %vm668, 1, 0
          %v797 = vsel %vm669, 1, 0
          %v798 = vsel %vm670, 1, 0
          %v799 = vsel %vm671, 1, 0
          %v800 = vsel %vm672, 1, 0
          %v801 = vsel %vm673, 1, 0
          %v802 = vsel %vm674, 1, 0
          %v803 = vsel %vm675, 1, 0
          %v804 = vcvt.s32.f32 %v676
          %v805 = vcvt.s32.f32 %v677
          %v806 = vcvt.s32.f32 %v678
          %v807 = vcvt.s32.f32 %v679
          %v808 = vcvt.s32.f32 %v680
          %v809 = vcvt.s32.f32 %v681
          %v810 = vcvt.s32.f32 %v682
          %v811 = vcvt.s32.f32 %v683
          %v812 = vcvt.s32.f32 %v684
          %v813 = vcvt.s32.f32 %v685
          %v814 = vcvt.s32.f32 %v686
          %v815 = vcvt.s32.f32 %v687
          %v816 = vcvt.s32.f32 %v688
          %v817 = vcvt.s32.f32 %v689
          %v818 = vcvt.s32.f32 %v690
          %v819 = vcvt.s32.f32 %v691
          %v820 = vcvt.s32.f32 %v692
          %v821 = vcvt.s32.f32 %v693
          %v822 = vcvt.s32.f32 %v694
          %v823 = vcvt.s32.f32 %v695
          %v824 = vcvt.s32.f32 %v696
          %v825 = vcvt.s32.f32 %v697
          %v826 = vcvt.s32.f32 %v698
          %v827 = vcvt.s32.f32 %v699
          %v828 = vcvt.s32.f32 %v700
          %v829 = vcvt.s32.f32 %v701
          %v830 = vcvt.s32.f32 %v702
          %v831 = vcvt.s32.f32 %v703
          %v832 = vcvt.s32.f32 %v704
          %v833 = vcvt.s32.f32 %v705
          %v834 = vcvt.s32.f32 %v706
          %v835 = vcvt.s32.f32 %v707
          %v836 = vcvt.s32.f32 %v708
          %v837 = vcvt.s32.f32 %v709
          %v838 = vcvt.s32.f32 %v710
          %v839 = vcvt.s32.f32 %v711
          %v840 = vcvt.s32.f32 %v712
          %v841 = vcvt.s32.f32 %v713
          %v842 = vcvt.s32.f32 %v714
          %v843 = vcvt.s32.f32 %v715
          %v844 = vcvt.s32.f32 %v716
          %v845 = vcvt.s32.f32 %v717
          %v846 = vcvt.s32.f32 %v718
          %v847 = vcvt.s32.f32 %v719
          %v848 = vcvt.s32.f32 %v720
          %v849 = vcvt.s32.f32 %v721
          %v850 = vcvt.s32.f32 %v722
          %v851 = vcvt.s32.f32 %v723
          %v852 = vcvt.s32.f32 %v724
          %v853 = vcvt.s32.f32 %v725
          %v854 = vcvt.s32.f32 %v726
          %v855 = vcvt.s32.f32 %v727
          %v856 = vcvt.s32.f32 %v728
          %v857 = vcvt.s32.f32 %v729
          %v858 = vcvt.s32.f32 %v730
          %v859 = vcvt.s32.f32 %v731
          %v860 = vcvt.s32.f32 %v732
          %v861 = vcvt.s32.f32 %v733
          %v862 = vcvt.s32.f32 %v734
          %v863 = vcvt.s32.f32 %v735
          %v864 = vcvt.s32.f32 %v736
          %v865 = vcvt.s32.f32 %v737
          %v866 = vcvt.s32.f32 %v738
          %v867 = vcvt.s32.f32 %v739
          %v868 = vcvt.s32.f32 %v740
          %v869 = vcvt.s32.f32 %v741
          %v870 = vcvt.s32.f32 %v742
          %v871 = vcvt.s32.f32 %v743
          %v872 = vcvt.s32.f32 %v744
          %v873 = vcvt.s32.f32 %v745
          %v874 = vcvt.s32.f32 %v746
          %v875 = vcvt.s32.f32 %v747
          %v876 = vcvt.s32.f32 %v748
          %v877 = vcvt.s32.f32 %v749
          %v878 = vcvt.s32.f32 %v750
          %v879 = vcvt.s32.f32 %v751
          %v880 = vcvt.s32.f32 %v752
          %v881 = vcvt.s32.f32 %v753
          %v882 = vcvt.s32.f32 %v754
          %v883 = vcvt.s32.f32 %v755
          %v884 = vcvt.s32.f32 %v756
          %v885 = vcvt.s32.f32 %v757
          %v886 = vcvt.s32.f32 %v758
          %v887 = vcvt.s32.f32 %v759
          %v888 = vcvt.s32.f32 %v760
          %v889 = vcvt.s32.f32 %v761
          %v890 = vcvt.s32.f32 %v762
          %v891 = vcvt.s32.f32 %v763
          %v892 = vcvt.s32.f32 %v764
          %v893 = vcvt.s32.f32 %v765
          %v894 = vcvt.s32.f32 %v766
          %v895 = vcvt.s32.f32 %v767
          %v896 = vcvt.s32.f32 %v768
          %v897 = vcvt.s32.f32 %v769
          %v898 = vcvt.s32.f32 %v770
          %v899 = vcvt.s32.f32 %v771
          %v900 = vcvt.s32.f32 %v772
          %v901 = vcvt.s32.f32 %v773
          %v902 = vcvt.s32.f32 %v774
          %v903 = vcvt.s32.f32 %v775
          %v904 = vcvt.s32.f32 %v776
          %v905 = vcvt.s32.f32 %v777
          %v906 = vcvt.s32.f32 %v778
          %v907 = vcvt.s32.f32 %v779
          %v908 = vcvt.s32.f32 %v780
          %v909 = vcvt.s32.f32 %v781
          %v910 = vcvt.s32.f32 %v782
          %v911 = vcvt.s32.f32 %v783
          %v912 = vcvt.s32.f32 %v784
          %v913 = vcvt.s32.f32 %v785
          %v914 = vcvt.s32.f32 %v786
          %v915 = vcvt.s32.f32 %v787
          %v916 = vcvt.s32.f32 %v788
          %v917 = vcvt.s32.f32 %v789
          %v918 = vcvt.s32.f32 %v790
          %v919 = vcvt.s32.f32 %v791
          %v920 = vcvt.s32.f32 %v792
          %v921 = vcvt.s32.f32 %v793
          %v922 = vcvt.s32.f32 %v794
          %v923 = vcvt.s32.f32 %v795
          %v924 = vcvt.s32.f32 %v796
          %v925 = vcvt.s32.f32 %v797
          %v926 = vcvt.s32.f32 %v798
          %v927 = vcvt.s32.f32 %v799
          %v928 = vcvt.s32.f32 %v800
          %v929 = vcvt.s32.f32 %v801
          %v930 = vcvt.s32.f32 %v802
          %v931 = vcvt.s32.f32 %v803
          %v932 = vpack.c.bf16 %v808, %v804
          %v933 = vpack.c.bf16 %v809, %v805
          %v934 = vpack.c.bf16 %v810, %v806
          %v935 = vpack.c.bf16 %v811, %v807
          %v936 = vpack.c.bf16 %v816, %v812
          %v937 = vpack.c.bf16 %v817, %v813
          %v938 = vpack.c.bf16 %v818, %v814
          %v939 = vpack.c.bf16 %v819, %v815
          %v940 = vpack.c.bf16 %v824, %v820
          %v941 = vpack.c.bf16 %v825, %v821
          %v942 = vpack.c.bf16 %v826, %v822
          %v943 = vpack.c.bf16 %v827, %v823
          %v944 = vpack.c.bf16 %v832, %v828
          %v945 = vpack.c.bf16 %v833, %v829
          %v946 = vpack.c.bf16 %v834, %v830
          %v947 = vpack.c.bf16 %v835, %v831
          %v948 = vpack.c.bf16 %v840, %v836
          %v949 = vpack.c.bf16 %v841, %v837
          %v950 = vpack.c.bf16 %v842, %v838
          %v951 = vpack.c.bf16 %v843, %v839
          %v952 = vpack.c.bf16 %v848, %v844
          %v953 = vpack.c.bf16 %v849, %v845
          %v954 = vpack.c.bf16 %v850, %v846
          %v955 = vpack.c.bf16 %v851, %v847
          %v956 = vpack.c.bf16 %v856, %v852
          %v957 = vpack.c.bf16 %v857, %v853
          %v958 = vpack.c.bf16 %v858, %v854
          %v959 = vpack.c.bf16 %v859, %v855
          %v960 = vpack.c.bf16 %v864, %v860
          %v961 = vpack.c.bf16 %v865, %v861
          %v962 = vpack.c.bf16 %v866, %v862
          %v963 = vpack.c.bf16 %v867, %v863
          %v964 = vpack.c.bf16 %v872, %v868
          %v965 = vpack.c.bf16 %v873, %v869
          %v966 = vpack.c.bf16 %v874, %v870
          %v967 = vpack.c.bf16 %v875, %v871
          %v968 = vpack.c.bf16 %v880, %v876
          %v969 = vpack.c.bf16 %v881, %v877
          %v970 = vpack.c.bf16 %v882, %v878
          %v971 = vpack.c.bf16 %v883, %v879
          %v972 = vpack.c.bf16 %v888, %v884
          %v973 = vpack.c.bf16 %v889, %v885
          %v974 = vpack.c.bf16 %v890, %v886
          %v975 = vpack.c.bf16 %v891, %v887
          %v976 = vpack.c.bf16 %v896, %v892
          %v977 = vpack.c.bf16 %v897, %v893
          %v978 = vpack.c.bf16 %v898, %v894
          %v979 = vpack.c.bf16 %v899, %v895
          %v980 = vpack.c.bf16 %v904, %v900
          %v981 = vpack.c.bf16 %v905, %v901
          %v982 = vpack.c.bf16 %v906, %v902
          %v983 = vpack.c.bf16 %v907, %v903
          %v984 = vpack.c.bf16 %v912, %v908
          %v985 = vpack.c.bf16 %v913, %v909
          %v986 = vpack.c.bf16 %v914, %v910
          %v987 = vpack.c.bf16 %v915, %v911
          %v988 = vpack.c.bf16 %v920, %v916
          %v989 = vpack.c.bf16 %v921, %v917
          %v990 = vpack.c.bf16 %v922, %v918
          %v991 = vpack.c.bf16 %v923, %v919
          %v992 = vpack.c.bf16 %v928, %v924
          %v993 = vpack.c.bf16 %v929, %v925
          %v994 = vpack.c.bf16 %v930, %v926
          %v995 = vpack.c.bf16 %v931, %v927
          %v996 = vld [vmem:[#allocation2] sm:$0xff]
          %v997 = vld [vmem:[#allocation2 + $0x8] sm:$0xff]
          %v998 = vld [vmem:[#allocation2 + $0x10] sm:$0xff]
          %v999 = vld [vmem:[#allocation2 + $0x18] sm:$0xff]
          %v1000 = vld [vmem:[#allocation2 + $0x20] sm:$0xff]
          %v1001 = vld [vmem:[#allocation2 + $0x28] sm:$0xff]
          %v1002 = vld [vmem:[#allocation2 + $0x30] sm:$0xff]
          %v1003 = vld [vmem:[#allocation2 + $0x38] sm:$0xff]
          %v1004 = vld [vmem:[#allocation2 + $0x40] sm:$0xff]
          %v1005 = vld [vmem:[#allocation2 + $0x48] sm:$0xff]
          %v1006 = vld [vmem:[#allocation2 + $0x50] sm:$0xff]
          %v1007 = vld [vmem:[#allocation2 + $0x58] sm:$0xff]
          %v1008 = vld [vmem:[#allocation2 + $0x60] sm:$0xff]
          %v1009 = vld [vmem:[#allocation2 + $0x68] sm:$0xff]
          %v1010 = vld [vmem:[#allocation2 + $0x70] sm:$0xff]
          %v1011 = vld [vmem:[#allocation2 + $0x78] sm:$0xff]
          %v1012 = vld [vmem:[#allocation2 + $0x80] sm:$0xff]
          %v1013 = vld [vmem:[#allocation2 + $0x88] sm:$0xff]
          %v1014 = vld [vmem:[#allocation2 + $0x90] sm:$0xff]
          %v1015 = vld [vmem:[#allocation2 + $0x98] sm:$0xff]
          %v1016 = vld [vmem:[#allocation2 + $0xa0] sm:$0xff]
          %v1017 = vld [vmem:[#allocation2 + $0xa8] sm:$0xff]
          %v1018 = vld [vmem:[#allocation2 + $0xb0] sm:$0xff]
          %v1019 = vld [vmem:[#allocation2 + $0xb8] sm:$0xff]
          %v1020 = vld [vmem:[#allocation2 + $0xc0] sm:$0xff]
          %v1021 = vld [vmem:[#allocation2 + $0xc8] sm:$0xff]
          %v1022 = vld [vmem:[#allocation2 + $0xd0] sm:$0xff]
          %v1023 = vld [vmem:[#allocation2 + $0xd8] sm:$0xff]
          %v1024 = vld [vmem:[#allocation2 + $0xe0] sm:$0xff]
          %v1025 = vld [vmem:[#allocation2 + $0xe8] sm:$0xff]
          %v1026 = vld [vmem:[#allocation2 + $0xf0] sm:$0xff]
          %v1027 = vld [vmem:[#allocation2 + $0xf8] sm:$0xff]
          %v1028 = vld [vmem:[%s362] sm:$0xf]
          %v1029 = vld [vmem:[%s362 + $0x4] sm:$0xf]
          %v1030 = vld [vmem:[%s362 + $0x8] sm:$0xf]
          %v1031 = vld [vmem:[%s362 + $0xc] sm:$0xf]
          %v1032 = vld [vmem:[%s362 + $0x10] sm:$0xf]
          %v1033 = vld [vmem:[%s362 + $0x14] sm:$0xf]
          %v1034 = vld [vmem:[%s362 + $0x18] sm:$0xf]
          %v1035 = vld [vmem:[%s362 + $0x1c] sm:$0xf]
          %v1036 = vld [vmem:[%s362 + $0x20] sm:$0xf]
          %v1037 = vld [vmem:[%s362 + $0x24] sm:$0xf]
          %v1038 = vld [vmem:[%s362 + $0x28] sm:$0xf]
          %v1039 = vld [vmem:[%s362 + $0x2c] sm:$0xf]
          %v1040 = vld [vmem:[%s362 + $0x30] sm:$0xf]
          %v1041 = vld [vmem:[%s362 + $0x34] sm:$0xf]
          %v1042 = vld [vmem:[%s362 + $0x38] sm:$0xf]
          %v1043 = vld [vmem:[%s362 + $0x3c] sm:$0xf]
          %v1044 = vld [vmem:[%s362 + $0x40] sm:$0xf]
          %v1045 = vld [vmem:[%s362 + $0x44] sm:$0xf]
          %v1046 = vld [vmem:[%s362 + $0x48] sm:$0xf]
          %v1047 = vld [vmem:[%s362 + $0x4c] sm:$0xf]
          %v1048 = vld [vmem:[%s362 + $0x50] sm:$0xf]
          %v1049 = vld [vmem:[%s362 + $0x54] sm:$0xf]
          %v1050 = vld [vmem:[%s362 + $0x58] sm:$0xf]
          %v1051 = vld [vmem:[%s362 + $0x5c] sm:$0xf]
          %v1052 = vld [vmem:[%s362 + $0x60] sm:$0xf]
          %v1053 = vld [vmem:[%s362 + $0x64] sm:$0xf]
          %v1054 = vld [vmem:[%s362 + $0x68] sm:$0xf]
          %v1055 = vld [vmem:[%s362 + $0x6c] sm:$0xf]
          %v1056 = vld [vmem:[%s362 + $0x70] sm:$0xf]
          %v1057 = vld [vmem:[%s362 + $0x74] sm:$0xf]
          %v1058 = vld [vmem:[%s362 + $0x78] sm:$0xf]
          %v1059 = vld [vmem:[%s362 + $0x7c] sm:$0xf]
          %v1060 = vld [vmem:[%s362 + $0x80] sm:$0xf]
          %v1061 = vld [vmem:[%s362 + $0x84] sm:$0xf]
          %v1062 = vld [vmem:[%s362 + $0x88] sm:$0xf]
          %v1063 = vld [vmem:[%s362 + $0x8c] sm:$0xf]
          %v1064 = vld [vmem:[%s362 + $0x90] sm:$0xf]
          %v1065 = vld [vmem:[%s362 + $0x94] sm:$0xf]
          %v1066 = vld [vmem:[%s362 + $0x98] sm:$0xf]
          %v1067 = vld [vmem:[%s362 + $0x9c] sm:$0xf]
          %v1068 = vld [vmem:[%s362 + $0xa0] sm:$0xf]
          %v1069 = vld [vmem:[%s362 + $0xa4] sm:$0xf]
          %v1070 = vld [vmem:[%s362 + $0xa8] sm:$0xf]
          %v1071 = vld [vmem:[%s362 + $0xac] sm:$0xf]
          %v1072 = vld [vmem:[%s362 + $0xb0] sm:$0xf]
          %v1073 = vld [vmem:[%s362 + $0xb4] sm:$0xf]
          %v1074 = vld [vmem:[%s362 + $0xb8] sm:$0xf]
          %v1075 = vld [vmem:[%s362 + $0xbc] sm:$0xf]
          %v1076 = vld [vmem:[%s362 + $0xc0] sm:$0xf]
          %v1077 = vld [vmem:[%s362 + $0xc4] sm:$0xf]
          %v1078 = vld [vmem:[%s362 + $0xc8] sm:$0xf]
          %v1079 = vld [vmem:[%s362 + $0xcc] sm:$0xf]
          %v1080 = vld [vmem:[%s362 + $0xd0] sm:$0xf]
          %v1081 = vld [vmem:[%s362 + $0xd4] sm:$0xf]
          %v1082 = vld [vmem:[%s362 + $0xd8] sm:$0xf]
          %v1083 = vld [vmem:[%s362 + $0xdc] sm:$0xf]
          %v1084 = vld [vmem:[%s362 + $0xe0] sm:$0xf]
          %v1085 = vld [vmem:[%s362 + $0xe4] sm:$0xf]
          %v1086 = vld [vmem:[%s362 + $0xe8] sm:$0xf]
          %v1087 = vld [vmem:[%s362 + $0xec] sm:$0xf]
          %v1088 = vld [vmem:[%s362 + $0xf0] sm:$0xf]
          %v1089 = vld [vmem:[%s362 + $0xf4] sm:$0xf]
          %v1090 = vld [vmem:[%s362 + $0xf8] sm:$0xf]
          %v1091 = vld [vmem:[%s362 + $0xfc] sm:$0xf]
          %v1156 = vunpack.c.l.b16 %v1028
          %v1157 = vunpack.c.l.b16 %v1029
          %v1158 = vunpack.c.l.b16 %v1030
          %v1159 = vunpack.c.l.b16 %v1031
          %v1160 = vunpack.c.l.b16 %v1032
          %v1161 = vunpack.c.l.b16 %v1033
          %v1162 = vunpack.c.l.b16 %v1034
          %v1163 = vunpack.c.l.b16 %v1035
          %v1164 = vunpack.c.l.b16 %v1036
          %v1165 = vunpack.c.l.b16 %v1037
          %v1166 = vunpack.c.l.b16 %v1038
          %v1167 = vunpack.c.l.b16 %v1039
          %v1168 = vunpack.c.l.b16 %v1040
          %v1169 = vunpack.c.l.b16 %v1041
          %v1170 = vunpack.c.l.b16 %v1042
          %v1171 = vunpack.c.l.b16 %v1043
          %v1172 = vunpack.c.l.b16 %v1044
          %v1173 = vunpack.c.l.b16 %v1045
          %v1174 = vunpack.c.l.b16 %v1046
          %v1175 = vunpack.c.l.b16 %v1047
          %v1176 = vunpack.c.l.b16 %v1048
          %v1177 = vunpack.c.l.b16 %v1049
          %v1178 = vunpack.c.l.b16 %v1050
          %v1179 = vunpack.c.l.b16 %v1051
          %v1180 = vunpack.c.l.b16 %v1052
          %v1181 = vunpack.c.l.b16 %v1053
          %v1182 = vunpack.c.l.b16 %v1054
          %v1183 = vunpack.c.l.b16 %v1055
          %v1184 = vunpack.c.l.b16 %v1056
          %v1185 = vunpack.c.l.b16 %v1057
          %v1186 = vunpack.c.l.b16 %v1058
          %v1187 = vunpack.c.l.b16 %v1059
          %v1188 = vunpack.c.l.b16 %v1060
          %v1189 = vunpack.c.l.b16 %v1061
          %v1190 = vunpack.c.l.b16 %v1062
          %v1191 = vunpack.c.l.b16 %v1063
          %v1192 = vunpack.c.l.b16 %v1064
          %v1193 = vunpack.c.l.b16 %v1065
          %v1194 = vunpack.c.l.b16 %v1066
          %v1195 = vunpack.c.l.b16 %v1067
          %v1196 = vunpack.c.l.b16 %v1068
          %v1197 = vunpack.c.l.b16 %v1069
          %v1198 = vunpack.c.l.b16 %v1070
          %v1199 = vunpack.c.l.b16 %v1071
          %v1200 = vunpack.c.l.b16 %v1072
          %v1201 = vunpack.c.l.b16 %v1073
          %v1202 = vunpack.c.l.b16 %v1074
          %v1203 = vunpack.c.l.b16 %v1075
          %v1204 = vunpack.c.l.b16 %v1076
          %v1205 = vunpack.c.l.b16 %v1077
          %v1206 = vunpack.c.l.b16 %v1078
          %v1207 = vunpack.c.l.b16 %v1079
          %v1208 = vunpack.c.l.b16 %v1080
          %v1209 = vunpack.c.l.b16 %v1081
          %v1210 = vunpack.c.l.b16 %v1082
          %v1211 = vunpack.c.l.b16 %v1083
          %v1212 = vunpack.c.l.b16 %v1084
          %v1213 = vunpack.c.l.b16 %v1085
          %v1214 = vunpack.c.l.b16 %v1086
          %v1215 = vunpack.c.l.b16 %v1087
          %v1216 = vunpack.c.l.b16 %v1088
          %v1217 = vunpack.c.l.b16 %v1089
          %v1218 = vunpack.c.l.b16 %v1090
          %v1219 = vunpack.c.l.b16 %v1091
          %v1220 = vpack.c.b16 %v1157, %v1156
          %v1221 = vpack.c.b16 %v1159, %v1158
          %v1222 = vpack.c.b16 %v1161, %v1160
          %v1223 = vpack.c.b16 %v1163, %v1162
          %v1224 = vpack.c.b16 %v1165, %v1164
          %v1225 = vpack.c.b16 %v1167, %v1166
          %v1226 = vpack.c.b16 %v1169, %v1168
          %v1227 = vpack.c.b16 %v1171, %v1170
          %v1228 = vpack.c.b16 %v1173, %v1172
          %v1229 = vpack.c.b16 %v1175, %v1174
          %v1230 = vpack.c.b16 %v1177, %v1176
          %v1231 = vpack.c.b16 %v1179, %v1178
          %v1232 = vpack.c.b16 %v1181, %v1180
          %v1233 = vpack.c.b16 %v1183, %v1182
          %v1234 = vpack.c.b16 %v1185, %v1184
          %v1235 = vpack.c.b16 %v1187, %v1186
          %v1236 = vpack.c.b16 %v1189, %v1188
          %v1237 = vpack.c.b16 %v1191, %v1190
          %v1238 = vpack.c.b16 %v1193, %v1192
          %v1239 = vpack.c.b16 %v1195, %v1194
          %v1240 = vpack.c.b16 %v1197, %v1196
          %v1241 = vpack.c.b16 %v1199, %v1198
          %v1242 = vpack.c.b16 %v1201, %v1200
          %v1243 = vpack.c.b16 %v1203, %v1202
          %v1244 = vpack.c.b16 %v1205, %v1204
          %v1245 = vpack.c.b16 %v1207, %v1206
          %v1246 = vpack.c.b16 %v1209, %v1208
          %v1247 = vpack.c.b16 %v1211, %v1210
          %v1248 = vpack.c.b16 %v1213, %v1212
          %v1249 = vpack.c.b16 %v1215, %v1214
          %v1250 = vpack.c.b16 %v1217, %v1216
          %v1251 = vpack.c.b16 %v1219, %v1218
          %1284 = vmatpush.bf16.msra.mxu0 %v1227
          %1285 = vmatpush.bf16.msra.mxu0 %v1226
          %1286 = vmatpush.bf16.msra.mxu0 %v1225
          %1287 = vmatpush.bf16.msra.mxu0 %v1224
          %1288 = vmatpush.bf16.msra.mxu0 %v1223
          %1289 = vmatpush.bf16.msra.mxu0 %v1222
          %1290 = vmatpush.bf16.msra.mxu0 %v1221
          %1291 = vmatpush.bf16.msra.mxu0 %v1220
          %1292 = vmatmul.bf16.gmra.mxu0 %v932
          %v1293 = vpop.f32.mrf.mxu0
          %v1294 = vadd.f32 0.0, %v1293
          %v1295 = vpop.f32.mrf.mxu0
          %v1296 = vadd.f32 0.0, %v1295
          %1297 = vmatmul.bf16.gmra.mxu0 %v936
          %v1298 = vpop.f32.mrf.mxu0
          %v1299 = vadd.f32 0.0, %v1298
          %v1300 = vpop.f32.mrf.mxu0
          %v1301 = vadd.f32 0.0, %v1300
          %1302 = vmatmul.bf16.gmra.mxu0 %v940
          %v1303 = vpop.f32.mrf.mxu0
          %v1304 = vadd.f32 0.0, %v1303
          %v1305 = vpop.f32.mrf.mxu0
          %v1306 = vadd.f32 0.0, %v1305
          %1307 = vmatmul.bf16.gmra.mxu0 %v944
          %v1308 = vpop.f32.mrf.mxu0
          %v1309 = vadd.f32 0.0, %v1308
          %v1310 = vpop.f32.mrf.mxu0
          %v1311 = vadd.f32 0.0, %v1310
          %1312 = vmatmul.bf16.gmra.mxu0 %v948
          %v1313 = vpop.f32.mrf.mxu0
          %v1314 = vadd.f32 0.0, %v1313
          %v1315 = vpop.f32.mrf.mxu0
          %v1316 = vadd.f32 0.0, %v1315
          %1317 = vmatmul.bf16.gmra.mxu0 %v952
          %v1318 = vpop.f32.mrf.mxu0
          %v1319 = vadd.f32 0.0, %v1318
          %v1320 = vpop.f32.mrf.mxu0
          %v1321 = vadd.f32 0.0, %v1320
          %1322 = vmatmul.bf16.gmra.mxu0 %v956
          %v1323 = vpop.f32.mrf.mxu0
          %v1324 = vadd.f32 0.0, %v1323
          %v1325 = vpop.f32.mrf.mxu0
          %v1326 = vadd.f32 0.0, %v1325
          %1327 = vmatmul.bf16.gmra.mxu0 %v960
          %v1328 = vpop.f32.mrf.mxu0
          %v1329 = vadd.f32 0.0, %v1328
          %v1330 = vpop.f32.mrf.mxu0
          %v1331 = vadd.f32 0.0, %v1330
          %1332 = vmatmul.bf16.gmra.mxu0 %v964
          %v1333 = vpop.f32.mrf.mxu0
          %v1334 = vadd.f32 0.0, %v1333
          %v1335 = vpop.f32.mrf.mxu0
          %v1336 = vadd.f32 0.0, %v1335
          %1337 = vmatmul.bf16.gmra.mxu0 %v968
          %v1338 = vpop.f32.mrf.mxu0
          %v1339 = vadd.f32 0.0, %v1338
          %v1340 = vpop.f32.mrf.mxu0
          %v1341 = vadd.f32 0.0, %v1340
          %1342 = vmatmul.bf16.gmra.mxu0 %v972
          %v1343 = vpop.f32.mrf.mxu0
          %v1344 = vadd.f32 0.0, %v1343
          %v1345 = vpop.f32.mrf.mxu0
          %v1346 = vadd.f32 0.0, %v1345
          %1347 = vmatmul.bf16.gmra.mxu0 %v976
          %v1348 = vpop.f32.mrf.mxu0
          %v1349 = vadd.f32 0.0, %v1348
          %v1350 = vpop.f32.mrf.mxu0
          %v1351 = vadd.f32 0.0, %v1350
          %1352 = vmatmul.bf16.gmra.mxu0 %v980
          %v1353 = vpop.f32.mrf.mxu0
          %v1354 = vadd.f32 0.0, %v1353
          %v1355 = vpop.f32.mrf.mxu0
          %v1356 = vadd.f32 0.0, %v1355
          %1357 = vmatmul.bf16.gmra.mxu0 %v984
          %v1358 = vpop.f32.mrf.mxu0
          %v1359 = vadd.f32 0.0, %v1358
          %v1360 = vpop.f32.mrf.mxu0
          %v1361 = vadd.f32 0.0, %v1360
          %1362 = vmatmul.bf16.gmra.mxu0 %v988
          %v1363 = vpop.f32.mrf.mxu0
          %v1364 = vadd.f32 0.0, %v1363
          %v1365 = vpop.f32.mrf.mxu0
          %v1366 = vadd.f32 0.0, %v1365
          %1367 = vmatmul.bf16.gmra.mxu0 %v992
          %v1368 = vpop.f32.mrf.mxu0
          %v1369 = vadd.f32 0.0, %v1368
          %v1370 = vpop.f32.mrf.mxu0
          %v1371 = vadd.f32 0.0, %v1370
          %1372 = vdwg.mxu0
          %1373 = vmatpush.bf16.msra.mxu0 %v1235
          %1374 = vmatpush.bf16.msra.mxu0 %v1234
          %1375 = vmatpush.bf16.msra.mxu0 %v1233
          %1376 = vmatpush.bf16.msra.mxu0 %v1232
          %1377 = vmatpush.bf16.msra.mxu0 %v1231
          %1378 = vmatpush.bf16.msra.mxu0 %v1230
          %1379 = vmatpush.bf16.msra.mxu0 %v1229
          %1380 = vmatpush.bf16.msra.mxu0 %v1228
          %1381 = vmatmul.bf16.gmra.mxu0 %v933
          %v1382 = vpop.f32.mrf.mxu0
          %v1383 = vadd.f32 %v1294, %v1382
          %v1384 = vpop.f32.mrf.mxu0
          %v1385 = vadd.f32 %v1296, %v1384
          %1386 = vmatmul.bf16.gmra.mxu0 %v937
          %v1387 = vpop.f32.mrf.mxu0
          %v1388 = vadd.f32 %v1299, %v1387
          %v1389 = vpop.f32.mrf.mxu0
          %v1390 = vadd.f32 %v1301, %v1389
          %1391 = vmatmul.bf16.gmra.mxu0 %v941
          %v1392 = vpop.f32.mrf.mxu0
          %v1393 = vadd.f32 %v1304, %v1392
          %v1394 = vpop.f32.mrf.mxu0
          %v1395 = vadd.f32 %v1306, %v1394
          %1396 = vmatmul.bf16.gmra.mxu0 %v945
          %v1397 = vpop.f32.mrf.mxu0
          %v1398 = vadd.f32 %v1309, %v1397
          %v1399 = vpop.f32.mrf.mxu0
          %v1400 = vadd.f32 %v1311, %v1399
          %1401 = vmatmul.bf16.gmra.mxu0 %v949
          %v1402 = vpop.f32.mrf.mxu0
          %v1403 = vadd.f32 %v1314, %v1402
          %v1404 = vpop.f32.mrf.mxu0
          %v1405 = vadd.f32 %v1316, %v1404
          %1406 = vmatmul.bf16.gmra.mxu0 %v953
          %v1407 = vpop.f32.mrf.mxu0
          %v1408 = vadd.f32 %v1319, %v1407
          %v1409 = vpop.f32.mrf.mxu0
          %v1410 = vadd.f32 %v1321, %v1409
          %1411 = vmatmul.bf16.gmra.mxu0 %v957
          %v1412 = vpop.f32.mrf.mxu0
          %v1413 = vadd.f32 %v1324, %v1412
          %v1414 = vpop.f32.mrf.mxu0
          %v1415 = vadd.f32 %v1326, %v1414
          %1416 = vmatmul.bf16.gmra.mxu0 %v961
          %v1417 = vpop.f32.mrf.mxu0
          %v1418 = vadd.f32 %v1329, %v1417
          %v1419 = vpop.f32.mrf.mxu0
          %v1420 = vadd.f32 %v1331, %v1419
          %1421 = vmatmul.bf16.gmra.mxu0 %v965
          %v1422 = vpop.f32.mrf.mxu0
          %v1423 = vadd.f32 %v1334, %v1422
          %v1424 = vpop.f32.mrf.mxu0
          %v1425 = vadd.f32 %v1336, %v1424
          %1426 = vmatmul.bf16.gmra.mxu0 %v969
          %v1427 = vpop.f32.mrf.mxu0
          %v1428 = vadd.f32 %v1339, %v1427
          %v1429 = vpop.f32.mrf.mxu0
          %v1430 = vadd.f32 %v1341, %v1429
          %1431 = vmatmul.bf16.gmra.mxu0 %v973
          %v1432 = vpop.f32.mrf.mxu0
          %v1433 = vadd.f32 %v1344, %v1432
          %v1434 = vpop.f32.mrf.mxu0
          %v1435 = vadd.f32 %v1346, %v1434
          %1436 = vmatmul.bf16.gmra.mxu0 %v977
          %v1437 = vpop.f32.mrf.mxu0
          %v1438 = vadd.f32 %v1349, %v1437
          %v1439 = vpop.f32.mrf.mxu0
          %v1440 = vadd.f32 %v1351, %v1439
          %1441 = vmatmul.bf16.gmra.mxu0 %v981
          %v1442 = vpop.f32.mrf.mxu0
          %v1443 = vadd.f32 %v1354, %v1442
          %v1444 = vpop.f32.mrf.mxu0
          %v1445 = vadd.f32 %v1356, %v1444
          %1446 = vmatmul.bf16.gmra.mxu0 %v985
          %v1447 = vpop.f32.mrf.mxu0
          %v1448 = vadd.f32 %v1359, %v1447
          %v1449 = vpop.f32.mrf.mxu0
          %v1450 = vadd.f32 %v1361, %v1449
          %1451 = vmatmul.bf16.gmra.mxu0 %v989
          %v1452 = vpop.f32.mrf.mxu0
          %v1453 = vadd.f32 %v1364, %v1452
          %v1454 = vpop.f32.mrf.mxu0
          %v1455 = vadd.f32 %v1366, %v1454
          %1456 = vmatmul.bf16.gmra.mxu0 %v993
          %v1457 = vpop.f32.mrf.mxu0
          %v1458 = vadd.f32 %v1369, %v1457
          %v1459 = vpop.f32.mrf.mxu0
          %v1460 = vadd.f32 %v1371, %v1459
          %1461 = vdwg.mxu0
          %1462 = vmatpush.bf16.msra.mxu0 %v1243
          %1463 = vmatpush.bf16.msra.mxu0 %v1242
          %1464 = vmatpush.bf16.msra.mxu0 %v1241
          %1465 = vmatpush.bf16.msra.mxu0 %v1240
          %1466 = vmatpush.bf16.msra.mxu0 %v1239
          %1467 = vmatpush.bf16.msra.mxu0 %v1238
          %1468 = vmatpush.bf16.msra.mxu0 %v1237
          %1469 = vmatpush.bf16.msra.mxu0 %v1236
          %1470 = vmatmul.bf16.gmra.mxu0 %v934
          %v1471 = vpop.f32.mrf.mxu0
          %v1472 = vadd.f32 %v1383, %v1471
          %v1473 = vpop.f32.mrf.mxu0
          %v1474 = vadd.f32 %v1385, %v1473
          %1475 = vmatmul.bf16.gmra.mxu0 %v938
          %v1476 = vpop.f32.mrf.mxu0
          %v1477 = vadd.f32 %v1388, %v1476
          %v1478 = vpop.f32.mrf.mxu0
          %v1479 = vadd.f32 %v1390, %v1478
          %1480 = vmatmul.bf16.gmra.mxu0 %v942
          %v1481 = vpop.f32.mrf.mxu0
          %v1482 = vadd.f32 %v1393, %v1481
          %v1483 = vpop.f32.mrf.mxu0
          %v1484 = vadd.f32 %v1395, %v1483
          %1485 = vmatmul.bf16.gmra.mxu0 %v946
          %v1486 = vpop.f32.mrf.mxu0
          %v1487 = vadd.f32 %v1398, %v1486
          %v1488 = vpop.f32.mrf.mxu0
          %v1489 = vadd.f32 %v1400, %v1488
          %1490 = vmatmul.bf16.gmra.mxu0 %v950
          %v1491 = vpop.f32.mrf.mxu0
          %v1492 = vadd.f32 %v1403, %v1491
          %v1493 = vpop.f32.mrf.mxu0
          %v1494 = vadd.f32 %v1405, %v1493
          %1495 = vmatmul.bf16.gmra.mxu0 %v954
          %v1496 = vpop.f32.mrf.mxu0
          %v1497 = vadd.f32 %v1408, %v1496
          %v1498 = vpop.f32.mrf.mxu0
          %v1499 = vadd.f32 %v1410, %v1498
          %1500 = vmatmul.bf16.gmra.mxu0 %v958
          %v1501 = vpop.f32.mrf.mxu0
          %v1502 = vadd.f32 %v1413, %v1501
          %v1503 = vpop.f32.mrf.mxu0
          %v1504 = vadd.f32 %v1415, %v1503
          %1505 = vmatmul.bf16.gmra.mxu0 %v962
          %v1506 = vpop.f32.mrf.mxu0
          %v1507 = vadd.f32 %v1418, %v1506
          %v1508 = vpop.f32.mrf.mxu0
          %v1509 = vadd.f32 %v1420, %v1508
          %1510 = vmatmul.bf16.gmra.mxu0 %v966
          %v1511 = vpop.f32.mrf.mxu0
          %v1512 = vadd.f32 %v1423, %v1511
          %v1513 = vpop.f32.mrf.mxu0
          %v1514 = vadd.f32 %v1425, %v1513
          %1515 = vmatmul.bf16.gmra.mxu0 %v970
          %v1516 = vpop.f32.mrf.mxu0
          %v1517 = vadd.f32 %v1428, %v1516
          %v1518 = vpop.f32.mrf.mxu0
          %v1519 = vadd.f32 %v1430, %v1518
          %1520 = vmatmul.bf16.gmra.mxu0 %v974
          %v1521 = vpop.f32.mrf.mxu0
          %v1522 = vadd.f32 %v1433, %v1521
          %v1523 = vpop.f32.mrf.mxu0
          %v1524 = vadd.f32 %v1435, %v1523
          %1525 = vmatmul.bf16.gmra.mxu0 %v978
          %v1526 = vpop.f32.mrf.mxu0
          %v1527 = vadd.f32 %v1438, %v1526
          %v1528 = vpop.f32.mrf.mxu0
          %v1529 = vadd.f32 %v1440, %v1528
          %1530 = vmatmul.bf16.gmra.mxu0 %v982
          %v1531 = vpop.f32.mrf.mxu0
          %v1532 = vadd.f32 %v1443, %v1531
          %v1533 = vpop.f32.mrf.mxu0
          %v1534 = vadd.f32 %v1445, %v1533
          %1535 = vmatmul.bf16.gmra.mxu0 %v986
          %v1536 = vpop.f32.mrf.mxu0
          %v1537 = vadd.f32 %v1448, %v1536
          %v1538 = vpop.f32.mrf.mxu0
          %v1539 = vadd.f32 %v1450, %v1538
          %1540 = vmatmul.bf16.gmra.mxu0 %v990
          %v1541 = vpop.f32.mrf.mxu0
          %v1542 = vadd.f32 %v1453, %v1541
          %v1543 = vpop.f32.mrf.mxu0
          %v1544 = vadd.f32 %v1455, %v1543
          %1545 = vmatmul.bf16.gmra.mxu0 %v994
          %v1546 = vpop.f32.mrf.mxu0
          %v1547 = vadd.f32 %v1458, %v1546
          %v1548 = vpop.f32.mrf.mxu0
          %v1549 = vadd.f32 %v1460, %v1548
          %1550 = vdwg.mxu0
          %1551 = vmatpush.bf16.msra.mxu0 %v1251
          %1552 = vmatpush.bf16.msra.mxu0 %v1250
          %1553 = vmatpush.bf16.msra.mxu0 %v1249
          %1554 = vmatpush.bf16.msra.mxu0 %v1248
          %1555 = vmatpush.bf16.msra.mxu0 %v1247
          %1556 = vmatpush.bf16.msra.mxu0 %v1246
          %1557 = vmatpush.bf16.msra.mxu0 %v1245
          %1558 = vmatpush.bf16.msra.mxu0 %v1244
          %1559 = vmatmul.bf16.gmra.mxu0 %v935
          %v1560 = vpop.f32.mrf.mxu0
          %v1561 = vadd.f32 %v1472, %v1560
          %v1562 = vpop.f32.mrf.mxu0
          %v1563 = vadd.f32 %v1474, %v1562
          %1564 = vmatmul.bf16.gmra.mxu0 %v939
          %v1565 = vpop.f32.mrf.mxu0
          %v1566 = vadd.f32 %v1477, %v1565
          %v1567 = vpop.f32.mrf.mxu0
          %v1568 = vadd.f32 %v1479, %v1567
          %1569 = vmatmul.bf16.gmra.mxu0 %v943
          %v1570 = vpop.f32.mrf.mxu0
          %v1571 = vadd.f32 %v1482, %v1570
          %v1572 = vpop.f32.mrf.mxu0
          %v1573 = vadd.f32 %v1484, %v1572
          %1574 = vmatmul.bf16.gmra.mxu0 %v947
          %v1575 = vpop.f32.mrf.mxu0
          %v1576 = vadd.f32 %v1487, %v1575
          %v1577 = vpop.f32.mrf.mxu0
          %v1578 = vadd.f32 %v1489, %v1577
          %1579 = vmatmul.bf16.gmra.mxu0 %v951
          %v1580 = vpop.f32.mrf.mxu0
          %v1581 = vadd.f32 %v1492, %v1580
          %v1582 = vpop.f32.mrf.mxu0
          %v1583 = vadd.f32 %v1494, %v1582
          %1584 = vmatmul.bf16.gmra.mxu0 %v955
          %v1585 = vpop.f32.mrf.mxu0
          %v1586 = vadd.f32 %v1497, %v1585
          %v1587 = vpop.f32.mrf.mxu0
          %v1588 = vadd.f32 %v1499, %v1587
          %1589 = vmatmul.bf16.gmra.mxu0 %v959
          %v1590 = vpop.f32.mrf.mxu0
          %v1591 = vadd.f32 %v1502, %v1590
          %v1592 = vpop.f32.mrf.mxu0
          %v1593 = vadd.f32 %v1504, %v1592
          %1594 = vmatmul.bf16.gmra.mxu0 %v963
          %v1595 = vpop.f32.mrf.mxu0
          %v1596 = vadd.f32 %v1507, %v1595
          %v1597 = vpop.f32.mrf.mxu0
          %v1598 = vadd.f32 %v1509, %v1597
          %1599 = vmatmul.bf16.gmra.mxu0 %v967
          %v1600 = vpop.f32.mrf.mxu0
          %v1601 = vadd.f32 %v1512, %v1600
          %v1602 = vpop.f32.mrf.mxu0
          %v1603 = vadd.f32 %v1514, %v1602
          %1604 = vmatmul.bf16.gmra.mxu0 %v971
          %v1605 = vpop.f32.mrf.mxu0
          %v1606 = vadd.f32 %v1517, %v1605
          %v1607 = vpop.f32.mrf.mxu0
          %v1608 = vadd.f32 %v1519, %v1607
          %1609 = vmatmul.bf16.gmra.mxu0 %v975
          %v1610 = vpop.f32.mrf.mxu0
          %v1611 = vadd.f32 %v1522, %v1610
          %v1612 = vpop.f32.mrf.mxu0
          %v1613 = vadd.f32 %v1524, %v1612
          %1614 = vmatmul.bf16.gmra.mxu0 %v979
          %v1615 = vpop.f32.mrf.mxu0
          %v1616 = vadd.f32 %v1527, %v1615
          %v1617 = vpop.f32.mrf.mxu0
          %v1618 = vadd.f32 %v1529, %v1617
          %1619 = vmatmul.bf16.gmra.mxu0 %v983
          %v1620 = vpop.f32.mrf.mxu0
          %v1621 = vadd.f32 %v1532, %v1620
          %v1622 = vpop.f32.mrf.mxu0
          %v1623 = vadd.f32 %v1534, %v1622
          %1624 = vmatmul.bf16.gmra.mxu0 %v987
          %v1625 = vpop.f32.mrf.mxu0
          %v1626 = vadd.f32 %v1537, %v1625
          %v1627 = vpop.f32.mrf.mxu0
          %v1628 = vadd.f32 %v1539, %v1627
          %1629 = vmatmul.bf16.gmra.mxu0 %v991
          %v1630 = vpop.f32.mrf.mxu0
          %v1631 = vadd.f32 %v1542, %v1630
          %v1632 = vpop.f32.mrf.mxu0
          %v1633 = vadd.f32 %v1544, %v1632
          %1634 = vmatmul.bf16.gmra.mxu0 %v995
          %v1635 = vpop.f32.mrf.mxu0
          %v1636 = vadd.f32 %v1547, %v1635
          %v1637 = vpop.f32.mrf.mxu0
          %v1638 = vadd.f32 %v1549, %v1637
          %1639 = vdwg.mxu0
          %v1640 = vadd.f32 %v996, %v1561
          %v1641 = vadd.f32 %v997, %v1563
          %v1642 = vadd.f32 %v998, %v1566
          %v1643 = vadd.f32 %v999, %v1568
          %v1644 = vadd.f32 %v1000, %v1571
          %v1645 = vadd.f32 %v1001, %v1573
          %v1646 = vadd.f32 %v1002, %v1576
          %v1647 = vadd.f32 %v1003, %v1578
          %v1648 = vadd.f32 %v1004, %v1581
          %v1649 = vadd.f32 %v1005, %v1583
          %v1650 = vadd.f32 %v1006, %v1586
          %v1651 = vadd.f32 %v1007, %v1588
          %v1652 = vadd.f32 %v1008, %v1591
          %v1653 = vadd.f32 %v1009, %v1593
          %v1654 = vadd.f32 %v1010, %v1596
          %v1655 = vadd.f32 %v1011, %v1598
          %v1656 = vadd.f32 %v1012, %v1601
          %v1657 = vadd.f32 %v1013, %v1603
          %v1658 = vadd.f32 %v1014, %v1606
          %v1659 = vadd.f32 %v1015, %v1608
          %v1660 = vadd.f32 %v1016, %v1611
          %v1661 = vadd.f32 %v1017, %v1613
          %v1662 = vadd.f32 %v1018, %v1616
          %v1663 = vadd.f32 %v1019, %v1618
          %v1664 = vadd.f32 %v1020, %v1621
          %v1665 = vadd.f32 %v1021, %v1623
          %v1666 = vadd.f32 %v1022, %v1626
          %v1667 = vadd.f32 %v1023, %v1628
          %v1668 = vadd.f32 %v1024, %v1631
          %v1669 = vadd.f32 %v1025, %v1633
          %v1670 = vadd.f32 %v1026, %v1636
          %v1671 = vadd.f32 %v1027, %v1638
          %1672 = vst [vmem:[#allocation2] sm:$0xff] %v1640
          %1673 = vst [vmem:[#allocation2 + $0x8] sm:$0xff] %v1641
          %1674 = vst [vmem:[#allocation2 + $0x10] sm:$0xff] %v1642
          %1675 = vst [vmem:[#allocation2 + $0x18] sm:$0xff] %v1643
          %1676 = vst [vmem:[#allocation2 + $0x20] sm:$0xff] %v1644
          %1677 = vst [vmem:[#allocation2 + $0x28] sm:$0xff] %v1645
          %1678 = vst [vmem:[#allocation2 + $0x30] sm:$0xff] %v1646
          %1679 = vst [vmem:[#allocation2 + $0x38] sm:$0xff] %v1647
          %1680 = vst [vmem:[#allocation2 + $0x40] sm:$0xff] %v1648
          %1681 = vst [vmem:[#allocation2 + $0x48] sm:$0xff] %v1649
          %1682 = vst [vmem:[#allocation2 + $0x50] sm:$0xff] %v1650
          %1683 = vst [vmem:[#allocation2 + $0x58] sm:$0xff] %v1651
          %1684 = vst [vmem:[#allocation2 + $0x60] sm:$0xff] %v1652
          %1685 = vst [vmem:[#allocation2 + $0x68] sm:$0xff] %v1653
          %1686 = vst [vmem:[#allocation2 + $0x70] sm:$0xff] %v1654
          %1687 = vst [vmem:[#allocation2 + $0x78] sm:$0xff] %v1655
          %1688 = vst [vmem:[#allocation2 + $0x80] sm:$0xff] %v1656
          %1689 = vst [vmem:[#allocation2 + $0x88] sm:$0xff] %v1657
          %1690 = vst [vmem:[#allocation2 + $0x90] sm:$0xff] %v1658
          %1691 = vst [vmem:[#allocation2 + $0x98] sm:$0xff] %v1659
          %1692 = vst [vmem:[#allocation2 + $0xa0] sm:$0xff] %v1660
          %1693 = vst [vmem:[#allocation2 + $0xa8] sm:$0xff] %v1661
          %1694 = vst [vmem:[#allocation2 + $0xb0] sm:$0xff] %v1662
          %1695 = vst [vmem:[#allocation2 + $0xb8] sm:$0xff] %v1663
          %1696 = vst [vmem:[#allocation2 + $0xc0] sm:$0xff] %v1664
          %1697 = vst [vmem:[#allocation2 + $0xc8] sm:$0xff] %v1665
          %1698 = vst [vmem:[#allocation2 + $0xd0] sm:$0xff] %v1666
          %1699 = vst [vmem:[#allocation2 + $0xd8] sm:$0xff] %v1667
          %1700 = vst [vmem:[#allocation2 + $0xe0] sm:$0xff] %v1668
          %1701 = vst [vmem:[#allocation2 + $0xe8] sm:$0xff] %v1669
          %1702 = vst [vmem:[#allocation2 + $0xf0] sm:$0xff] %v1670
          %1703 = vst [vmem:[#allocation2 + $0xf8] sm:$0xff] %v1671
        $region64: #{tpu_custom_call.1} parent=39 // pred_fallthru
          _
        %p1704 = scmp.eq.s32.totalorder %s46, 1
        // Predicated region
        $region65: #{tpu_custom_call.1} parent=39 // pred_check
          %p1705 = pneg %p1704
        $region66: #{tpu_custom_call.1} parent=39 // pred_check_branch
          %1707 = sbr.rel (%p1705) target = $region68
        $region67: #{tpu_custom_call.1} parent=39 // pred_region
          %v1708 = vld [vmem:[%s372] sm:$0xf]
          %v1709 = vld [vmem:[%s372 + $0x4] sm:$0xf]
          %v1710 = vld [vmem:[%s372 + $0x8] sm:$0xf]
          %v1711 = vld [vmem:[%s372 + $0xc] sm:$0xf]
          %v1712 = vld [vmem:[%s372 + $0x10] sm:$0xf]
          %v1713 = vld [vmem:[%s372 + $0x14] sm:$0xf]
          %v1714 = vld [vmem:[%s372 + $0x18] sm:$0xf]
          %v1715 = vld [vmem:[%s372 + $0x1c] sm:$0xf]
          %v1716 = vld [vmem:[%s372 + $0x20] sm:$0xf]
          %v1717 = vld [vmem:[%s372 + $0x24] sm:$0xf]
          %v1718 = vld [vmem:[%s372 + $0x28] sm:$0xf]
          %v1719 = vld [vmem:[%s372 + $0x2c] sm:$0xf]
          %v1720 = vld [vmem:[%s372 + $0x30] sm:$0xf]
          %v1721 = vld [vmem:[%s372 + $0x34] sm:$0xf]
          %v1722 = vld [vmem:[%s372 + $0x38] sm:$0xf]
          %v1723 = vld [vmem:[%s372 + $0x3c] sm:$0xf]
          %v1724 = vld [vmem:[%s372 + $0x40] sm:$0xf]
          %v1725 = vld [vmem:[%s372 + $0x44] sm:$0xf]
          %v1726 = vld [vmem:[%s372 + $0x48] sm:$0xf]
          %v1727 = vld [vmem:[%s372 + $0x4c] sm:$0xf]
          %v1728 = vld [vmem:[%s372 + $0x50] sm:$0xf]
          %v1729 = vld [vmem:[%s372 + $0x54] sm:$0xf]
          %v1730 = vld [vmem:[%s372 + $0x58] sm:$0xf]
          %v1731 = vld [vmem:[%s372 + $0x5c] sm:$0xf]
          %v1732 = vld [vmem:[%s372 + $0x60] sm:$0xf]
          %v1733 = vld [vmem:[%s372 + $0x64] sm:$0xf]
          %v1734 = vld [vmem:[%s372 + $0x68] sm:$0xf]
          %v1735 = vld [vmem:[%s372 + $0x6c] sm:$0xf]
          %v1736 = vld [vmem:[%s372 + $0x70] sm:$0xf]
          %v1737 = vld [vmem:[%s372 + $0x74] sm:$0xf]
          %v1738 = vld [vmem:[%s372 + $0x78] sm:$0xf]
          %v1739 = vld [vmem:[%s372 + $0x7c] sm:$0xf]
          %v1740 = vunpack.c.l.bf16 %v1708
          %v1741 = vunpack.c.l.bf16 %v1709
          %v1742 = vunpack.c.l.bf16 %v1710
          %v1743 = vunpack.c.l.bf16 %v1711
          %v1744 = vunpack.c.l.bf16 %v1712
          %v1745 = vunpack.c.l.bf16 %v1713
          %v1746 = vunpack.c.l.bf16 %v1714
          %v1747 = vunpack.c.l.bf16 %v1715
          %v1748 = vunpack.c.l.bf16 %v1716
          %v1749 = vunpack.c.l.bf16 %v1717
          %v1750 = vunpack.c.l.bf16 %v1718
          %v1751 = vunpack.c.l.bf16 %v1719
          %v1752 = vunpack.c.l.bf16 %v1720
          %v1753 = vunpack.c.l.bf16 %v1721
          %v1754 = vunpack.c.l.bf16 %v1722
          %v1755 = vunpack.c.l.bf16 %v1723
          %v1756 = vunpack.c.l.bf16 %v1724
          %v1757 = vunpack.c.l.bf16 %v1725
          %v1758 = vunpack.c.l.bf16 %v1726
          %v1759 = vunpack.c.l.bf16 %v1727
          %v1760 = vunpack.c.l.bf16 %v1728
          %v1761 = vunpack.c.l.bf16 %v1729
          %v1762 = vunpack.c.l.bf16 %v1730
          %v1763 = vunpack.c.l.bf16 %v1731
          %v1764 = vunpack.c.l.bf16 %v1732
          %v1765 = vunpack.c.l.bf16 %v1733
          %v1766 = vunpack.c.l.bf16 %v1734
          %v1767 = vunpack.c.l.bf16 %v1735
          %v1768 = vunpack.c.l.bf16 %v1736
          %v1769 = vunpack.c.l.bf16 %v1737
          %v1770 = vunpack.c.l.bf16 %v1738
          %v1771 = vunpack.c.l.bf16 %v1739
          %v1772 = vld [vmem:[#allocation2] sm:$0xff]
          %v1773 = vld [vmem:[#allocation2 + $0x8] sm:$0xff]
          %v1774 = vld [vmem:[#allocation2 + $0x10] sm:$0xff]
          %v1775 = vld [vmem:[#allocation2 + $0x18] sm:$0xff]
          %v1776 = vld [vmem:[#allocation2 + $0x20] sm:$0xff]
          %v1777 = vld [vmem:[#allocation2 + $0x28] sm:$0xff]
          %v1778 = vld [vmem:[#allocation2 + $0x30] sm:$0xff]
          %v1779 = vld [vmem:[#allocation2 + $0x38] sm:$0xff]
          %v1780 = vld [vmem:[#allocation2 + $0x40] sm:$0xff]
          %v1781 = vld [vmem:[#allocation2 + $0x48] sm:$0xff]
          %v1782 = vld [vmem:[#allocation2 + $0x50] sm:$0xff]
          %v1783 = vld [vmem:[#allocation2 + $0x58] sm:$0xff]
          %v1784 = vld [vmem:[#allocation2 + $0x60] sm:$0xff]
          %v1785 = vld [vmem:[#allocation2 + $0x68] sm:$0xff]
          %v1786 = vld [vmem:[#allocation2 + $0x70] sm:$0xff]
          %v1787 = vld [vmem:[#allocation2 + $0x78] sm:$0xff]
          %v1788 = vld [vmem:[#allocation2 + $0x80] sm:$0xff]
          %v1789 = vld [vmem:[#allocation2 + $0x88] sm:$0xff]
          %v1790 = vld [vmem:[#allocation2 + $0x90] sm:$0xff]
          %v1791 = vld [vmem:[#allocation2 + $0x98] sm:$0xff]
          %v1792 = vld [vmem:[#allocation2 + $0xa0] sm:$0xff]
          %v1793 = vld [vmem:[#allocation2 + $0xa8] sm:$0xff]
          %v1794 = vld [vmem:[#allocation2 + $0xb0] sm:$0xff]
          %v1795 = vld [vmem:[#allocation2 + $0xb8] sm:$0xff]
          %v1796 = vld [vmem:[#allocation2 + $0xc0] sm:$0xff]
          %v1797 = vld [vmem:[#allocation2 + $0xc8] sm:$0xff]
          %v1798 = vld [vmem:[#allocation2 + $0xd0] sm:$0xff]
          %v1799 = vld [vmem:[#allocation2 + $0xd8] sm:$0xff]
          %v1800 = vld [vmem:[#allocation2 + $0xe0] sm:$0xff]
          %v1801 = vld [vmem:[#allocation2 + $0xe8] sm:$0xff]
          %v1802 = vld [vmem:[#allocation2 + $0xf0] sm:$0xff]
          %v1803 = vld [vmem:[#allocation2 + $0xf8] sm:$0xff]
          %v1804 = vadd.f32 %v1740, %v1772
          %v1805 = vadd.f32 %v1741, %v1773
          %v1806 = vadd.f32 %v1742, %v1774
          %v1807 = vadd.f32 %v1743, %v1775
          %v1808 = vadd.f32 %v1744, %v1776
          %v1809 = vadd.f32 %v1745, %v1777
          %v1810 = vadd.f32 %v1746, %v1778
          %v1811 = vadd.f32 %v1747, %v1779
          %v1812 = vadd.f32 %v1748, %v1780
          %v1813 = vadd.f32 %v1749, %v1781
          %v1814 = vadd.f32 %v1750, %v1782
          %v1815 = vadd.f32 %v1751, %v1783
          %v1816 = vadd.f32 %v1752, %v1784
          %v1817 = vadd.f32 %v1753, %v1785
          %v1818 = vadd.f32 %v1754, %v1786
          %v1819 = vadd.f32 %v1755, %v1787
          %v1820 = vadd.f32 %v1756, %v1788
          %v1821 = vadd.f32 %v1757, %v1789
          %v1822 = vadd.f32 %v1758, %v1790
          %v1823 = vadd.f32 %v1759, %v1791
          %v1824 = vadd.f32 %v1760, %v1792
          %v1825 = vadd.f32 %v1761, %v1793
          %v1826 = vadd.f32 %v1762, %v1794
          %v1827 = vadd.f32 %v1763, %v1795
          %v1828 = vadd.f32 %v1764, %v1796
          %v1829 = vadd.f32 %v1765, %v1797
          %v1830 = vadd.f32 %v1766, %v1798
          %v1831 = vadd.f32 %v1767, %v1799
          %v1832 = vadd.f32 %v1768, %v1800
          %v1833 = vadd.f32 %v1769, %v1801
          %v1834 = vadd.f32 %v1770, %v1802
          %v1835 = vadd.f32 %v1771, %v1803
          %v1836 = vpack.c.bf16 %v1805, %v1804
          %v1837 = vpack.c.bf16 %v1807, %v1806
          %v1838 = vpack.c.bf16 %v1809, %v1808
          %v1839 = vpack.c.bf16 %v1811, %v1810
          %v1840 = vpack.c.bf16 %v1813, %v1812
          %v1841 = vpack.c.bf16 %v1815, %v1814
          %v1842 = vpack.c.bf16 %v1817, %v1816
          %v1843 = vpack.c.bf16 %v1819, %v1818
          %v1844 = vpack.c.bf16 %v1821, %v1820
          %v1845 = vpack.c.bf16 %v1823, %v1822
          %v1846 = vpack.c.bf16 %v1825, %v1824
          %v1847 = vpack.c.bf16 %v1827, %v1826
          %v1848 = vpack.c.bf16 %v1829, %v1828
          %v1849 = vpack.c.bf16 %v1831, %v1830
          %v1850 = vpack.c.bf16 %v1833, %v1832
          %v1851 = vpack.c.bf16 %v1835, %v1834
          %v1852 = vld [vmem:[#allocation12] sm:$0xf]
          %v1853 = vld [vmem:[#allocation12 + $0x4] sm:$0xf]
          %v1854 = vld [vmem:[#allocation12 + $0x8] sm:$0xf]
          %v1855 = vld [vmem:[#allocation12 + $0xc] sm:$0xf]
          %v1856 = vld [vmem:[#allocation12 + $0x10] sm:$0xf]
          %v1857 = vld [vmem:[#allocation12 + $0x14] sm:$0xf]
          %v1858 = vld [vmem:[#allocation12 + $0x18] sm:$0xf]
          %v1859 = vld [vmem:[#allocation12 + $0x1c] sm:$0xf]
          %v1860 = vld [vmem:[#allocation12 + $0x20] sm:$0xf]
          %v1861 = vld [vmem:[#allocation12 + $0x24] sm:$0xf]
          %v1862 = vld [vmem:[#allocation12 + $0x28] sm:$0xf]
          %v1863 = vld [vmem:[#allocation12 + $0x2c] sm:$0xf]
          %v1864 = vld [vmem:[#allocation12 + $0x30] sm:$0xf]
          %v1865 = vld [vmem:[#allocation12 + $0x34] sm:$0xf]
          %v1866 = vld [vmem:[#allocation12 + $0x38] sm:$0xf]
          %v1867 = vld [vmem:[#allocation12 + $0x3c] sm:$0xf]
          %v1868 = vld [vmem:[%s6] sm:$0x1]
          %v1870 = vperm.slane %v1868, 0
          %v1888 = vunpack.c.l.b16 %v1852
          %v1889 = vunpack.c.l.b16 %v1853
          %v1890 = vunpack.c.l.b16 %v1854
          %v1891 = vunpack.c.l.b16 %v1855
          %v1892 = vunpack.c.l.b16 %v1856
          %v1893 = vunpack.c.l.b16 %v1857
          %v1894 = vunpack.c.l.b16 %v1858
          %v1895 = vunpack.c.l.b16 %v1859
          %v1896 = vunpack.c.l.b16 %v1860
          %v1897 = vunpack.c.l.b16 %v1861
          %v1898 = vunpack.c.l.b16 %v1862
          %v1899 = vunpack.c.l.b16 %v1863
          %v1900 = vunpack.c.l.b16 %v1864
          %v1901 = vunpack.c.l.b16 %v1865
          %v1902 = vunpack.c.l.b16 %v1866
          %v1903 = vunpack.c.l.b16 %v1867
          %v1904 = vpack.c.b16 %v1889, %v1888
          %v1905 = vpack.c.b16 %v1891, %v1890
          %v1906 = vpack.c.b16 %v1893, %v1892
          %v1907 = vpack.c.b16 %v1895, %v1894
          %v1908 = vpack.c.b16 %v1897, %v1896
          %v1909 = vpack.c.b16 %v1899, %v1898
          %v1910 = vpack.c.b16 %v1901, %v1900
          %v1911 = vpack.c.b16 %v1903, %v1902
          %1920 = vmatpush.bf16.msra.mxu0 %v1911
          %1921 = vmatpush.bf16.msra.mxu0 %v1910
          %1922 = vmatpush.bf16.msra.mxu0 %v1909
          %1923 = vmatpush.bf16.msra.mxu0 %v1908
          %1924 = vmatpush.bf16.msra.mxu0 %v1907
          %1925 = vmatpush.bf16.msra.mxu0 %v1906
          %1926 = vmatpush.bf16.msra.mxu0 %v1905
          %1927 = vmatpush.bf16.msra.mxu0 %v1904
          %1928 = vmatmul.bf16.gmra.mxu0 %v1836
          %v1929 = vpop.f32.mrf.mxu0
          %v1930 = vadd.f32 %v1870, %v1929
          %v1931 = vpop.f32.mrf.mxu0
          %v1932 = vadd.f32 %v1870, %v1931
          %1933 = vmatmul.bf16.gmra.mxu0 %v1837
          %v1934 = vpop.f32.mrf.mxu0
          %v1935 = vadd.f32 %v1870, %v1934
          %v1936 = vpop.f32.mrf.mxu0
          %v1937 = vadd.f32 %v1870, %v1936
          %1938 = vmatmul.bf16.gmra.mxu0 %v1838
          %v1939 = vpop.f32.mrf.mxu0
          %v1940 = vadd.f32 %v1870, %v1939
          %v1941 = vpop.f32.mrf.mxu0
          %v1942 = vadd.f32 %v1870, %v1941
          %1943 = vmatmul.bf16.gmra.mxu0 %v1839
          %v1944 = vpop.f32.mrf.mxu0
          %v1945 = vadd.f32 %v1870, %v1944
          %v1946 = vpop.f32.mrf.mxu0
          %v1947 = vadd.f32 %v1870, %v1946
          %1948 = vmatmul.bf16.gmra.mxu0 %v1840
          %v1949 = vpop.f32.mrf.mxu0
          %v1950 = vadd.f32 %v1870, %v1949
          %v1951 = vpop.f32.mrf.mxu0
          %v1952 = vadd.f32 %v1870, %v1951
          %1953 = vmatmul.bf16.gmra.mxu0 %v1841
          %v1954 = vpop.f32.mrf.mxu0
          %v1955 = vadd.f32 %v1870, %v1954
          %v1956 = vpop.f32.mrf.mxu0
          %v1957 = vadd.f32 %v1870, %v1956
          %1958 = vmatmul.bf16.gmra.mxu0 %v1842
          %v1959 = vpop.f32.mrf.mxu0
          %v1960 = vadd.f32 %v1870, %v1959
          %v1961 = vpop.f32.mrf.mxu0
          %v1962 = vadd.f32 %v1870, %v1961
          %1963 = vmatmul.bf16.gmra.mxu0 %v1843
          %v1964 = vpop.f32.mrf.mxu0
          %v1965 = vadd.f32 %v1870, %v1964
          %v1966 = vpop.f32.mrf.mxu0
          %v1967 = vadd.f32 %v1870, %v1966
          %1968 = vmatmul.bf16.gmra.mxu0 %v1844
          %v1969 = vpop.f32.mrf.mxu0
          %v1970 = vadd.f32 %v1870, %v1969
          %v1971 = vpop.f32.mrf.mxu0
          %v1972 = vadd.f32 %v1870, %v1971
          %1973 = vmatmul.bf16.gmra.mxu0 %v1845
          %v1974 = vpop.f32.mrf.mxu0
          %v1975 = vadd.f32 %v1870, %v1974
          %v1976 = vpop.f32.mrf.mxu0
          %v1977 = vadd.f32 %v1870, %v1976
          %1978 = vmatmul.bf16.gmra.mxu0 %v1846
          %v1979 = vpop.f32.mrf.mxu0
          %v1980 = vadd.f32 %v1870, %v1979
          %v1981 = vpop.f32.mrf.mxu0
          %v1982 = vadd.f32 %v1870, %v1981
          %1983 = vmatmul.bf16.gmra.mxu0 %v1847
          %v1984 = vpop.f32.mrf.mxu0
          %v1985 = vadd.f32 %v1870, %v1984
          %v1986 = vpop.f32.mrf.mxu0
          %v1987 = vadd.f32 %v1870, %v1986
          %1988 = vmatmul.bf16.gmra.mxu0 %v1848
          %v1989 = vpop.f32.mrf.mxu0
          %v1990 = vadd.f32 %v1870, %v1989
          %v1991 = vpop.f32.mrf.mxu0
          %v1992 = vadd.f32 %v1870, %v1991
          %1993 = vmatmul.bf16.gmra.mxu0 %v1849
          %v1994 = vpop.f32.mrf.mxu0
          %v1995 = vadd.f32 %v1870, %v1994
          %v1996 = vpop.f32.mrf.mxu0
          %v1997 = vadd.f32 %v1870, %v1996
          %1998 = vmatmul.bf16.gmra.mxu0 %v1850
          %v1999 = vpop.f32.mrf.mxu0
          %v2000 = vadd.f32 %v1870, %v1999
          %v2001 = vpop.f32.mrf.mxu0
          %v2002 = vadd.f32 %v1870, %v2001
          %2003 = vmatmul.bf16.gmra.mxu0 %v1851
          %v2004 = vpop.f32.mrf.mxu0
          %v2005 = vadd.f32 %v1870, %v2004
          %v2006 = vpop.f32.mrf.mxu0
          %v2007 = vadd.f32 %v1870, %v2006
          %2008 = vdwg.mxu0
          %v2009 = vmax.f32 %v1930, 0.0
          %v2010 = vmax.f32 %v1932, 0.0
          %v2011 = vmax.f32 %v1935, 0.0
          %v2012 = vmax.f32 %v1937, 0.0
          %v2013 = vmax.f32 %v1940, 0.0
          %v2014 = vmax.f32 %v1942, 0.0
          %v2015 = vmax.f32 %v1945, 0.0
          %v2016 = vmax.f32 %v1947, 0.0
          %v2017 = vmax.f32 %v1950, 0.0
          %v2018 = vmax.f32 %v1952, 0.0
          %v2019 = vmax.f32 %v1955, 0.0
          %v2020 = vmax.f32 %v1957, 0.0
          %v2021 = vmax.f32 %v1960, 0.0
          %v2022 = vmax.f32 %v1962, 0.0
          %v2023 = vmax.f32 %v1965, 0.0
          %v2024 = vmax.f32 %v1967, 0.0
          %v2025 = vmax.f32 %v1970, 0.0
          %v2026 = vmax.f32 %v1972, 0.0
          %v2027 = vmax.f32 %v1975, 0.0
          %v2028 = vmax.f32 %v1977, 0.0
          %v2029 = vmax.f32 %v1980, 0.0
          %v2030 = vmax.f32 %v1982, 0.0
          %v2031 = vmax.f32 %v1985, 0.0
          %v2032 = vmax.f32 %v1987, 0.0
          %v2033 = vmax.f32 %v1990, 0.0
          %v2034 = vmax.f32 %v1992, 0.0
          %v2035 = vmax.f32 %v1995, 0.0
          %v2036 = vmax.f32 %v1997, 0.0
          %v2037 = vmax.f32 %v2000, 0.0
          %v2038 = vmax.f32 %v2002, 0.0
          %v2039 = vmax.f32 %v2005, 0.0
          %v2040 = vmax.f32 %v2007, 0.0
          %v2041 = vpack.c.bf16 %v2009, %v2009
          %v2042 = vpack.c.bf16 %v2010, %v2010
          %v2043 = vpack.c.bf16 %v2011, %v2011
          %v2044 = vpack.c.bf16 %v2012, %v2012
          %v2045 = vpack.c.bf16 %v2013, %v2013
          %v2046 = vpack.c.bf16 %v2014, %v2014
          %v2047 = vpack.c.bf16 %v2015, %v2015
          %v2048 = vpack.c.bf16 %v2016, %v2016
          %v2049 = vpack.c.bf16 %v2017, %v2017
          %v2050 = vpack.c.bf16 %v2018, %v2018
          %v2051 = vpack.c.bf16 %v2019, %v2019
          %v2052 = vpack.c.bf16 %v2020, %v2020
          %v2053 = vpack.c.bf16 %v2021, %v2021
          %v2054 = vpack.c.bf16 %v2022, %v2022
          %v2055 = vpack.c.bf16 %v2023, %v2023
          %v2056 = vpack.c.bf16 %v2024, %v2024
          %v2057 = vpack.c.bf16 %v2025, %v2025
          %v2058 = vpack.c.bf16 %v2026, %v2026
          %v2059 = vpack.c.bf16 %v2027, %v2027
          %v2060 = vpack.c.bf16 %v2028, %v2028
          %v2061 = vpack.c.bf16 %v2029, %v2029
          %v2062 = vpack.c.bf16 %v2030, %v2030
          %v2063 = vpack.c.bf16 %v2031, %v2031
          %v2064 = vpack.c.bf16 %v2032, %v2032
          %v2065 = vpack.c.bf16 %v2033, %v2033
          %v2066 = vpack.c.bf16 %v2034, %v2034
          %v2067 = vpack.c.bf16 %v2035, %v2035
          %v2068 = vpack.c.bf16 %v2036, %v2036
          %v2069 = vpack.c.bf16 %v2037, %v2037
          %v2070 = vpack.c.bf16 %v2038, %v2038
          %v2071 = vpack.c.bf16 %v2039, %v2039
          %v2072 = vpack.c.bf16 %v2040, %v2040
          %2073 = vst [vmem:[%s414] sm:$0xf] %v2041
          %2074 = vst [vmem:[%s414 + $0x4] sm:$0xf] %v2042
          %2075 = vst [vmem:[%s414 + $0x8] sm:$0xf] %v2043
          %2076 = vst [vmem:[%s414 + $0xc] sm:$0xf] %v2044
          %2077 = vst [vmem:[%s414 + $0x10] sm:$0xf] %v2045
          %2078 = vst [vmem:[%s414 + $0x14] sm:$0xf] %v2046
          %2079 = vst [vmem:[%s414 + $0x18] sm:$0xf] %v2047
          %2080 = vst [vmem:[%s414 + $0x1c] sm:$0xf] %v2048
          %2081 = vst [vmem:[%s414 + $0x20] sm:$0xf] %v2049
          %2082 = vst [vmem:[%s414 + $0x24] sm:$0xf] %v2050
          %2083 = vst [vmem:[%s414 + $0x28] sm:$0xf] %v2051
          %2084 = vst [vmem:[%s414 + $0x2c] sm:$0xf] %v2052
          %2085 = vst [vmem:[%s414 + $0x30] sm:$0xf] %v2053
          %2086 = vst [vmem:[%s414 + $0x34] sm:$0xf] %v2054
          %2087 = vst [vmem:[%s414 + $0x38] sm:$0xf] %v2055
          %2088 = vst [vmem:[%s414 + $0x3c] sm:$0xf] %v2056
          %2089 = vst [vmem:[%s414 + $0x40] sm:$0xf] %v2057
          %2090 = vst [vmem:[%s414 + $0x44] sm:$0xf] %v2058
          %2091 = vst [vmem:[%s414 + $0x48] sm:$0xf] %v2059
          %2092 = vst [vmem:[%s414 + $0x4c] sm:$0xf] %v2060
          %2093 = vst [vmem:[%s414 + $0x50] sm:$0xf] %v2061
          %2094 = vst [vmem:[%s414 + $0x54] sm:$0xf] %v2062
          %2095 = vst [vmem:[%s414 + $0x58] sm:$0xf] %v2063
          %2096 = vst [vmem:[%s414 + $0x5c] sm:$0xf] %v2064
          %2097 = vst [vmem:[%s414 + $0x60] sm:$0xf] %v2065
          %2098 = vst [vmem:[%s414 + $0x64] sm:$0xf] %v2066
          %2099 = vst [vmem:[%s414 + $0x68] sm:$0xf] %v2067
          %2100 = vst [vmem:[%s414 + $0x6c] sm:$0xf] %v2068
          %2101 = vst [vmem:[%s414 + $0x70] sm:$0xf] %v2069
          %2102 = vst [vmem:[%s414 + $0x74] sm:$0xf] %v2070
          %2103 = vst [vmem:[%s414 + $0x78] sm:$0xf] %v2071
          %2104 = vst [vmem:[%s414 + $0x7c] sm:$0xf] %v2072
        $region68: #{tpu_custom_call.1} parent=39 // pred_fallthru
          _
        %s2105 = sand.u32 %s213, 1
        %s2106 = scalar_lea.sflag [#allocation8], %s2105
        %s2107 = sand.u32 %s213, 1
        %s2108 = smul.addr %s2107, 128
        %s2109 = scalar_lea.vmem [#allocation14], %s2108
        // Predicated region
        $region69: #{tpu_custom_call.1} parent=39 // pred_check
          %p2110 = pneg %p223
        $region70: #{tpu_custom_call.1} parent=39 // pred_check_branch
          %2112 = sbr.rel (%p2110) target = $region72
        $region71: #{tpu_custom_call.1} parent=39 // pred_region
          %s2113 = smul.u32 32, %s45
          %2115 = vsyncadd %s2106, 0
          %s2116 = smul.addr %s2113, 4
          %s2117 = scalar_lea.hbm %s7, %s2116
          %s2118 = sshll.u32 %s2109, 4
          %s2119 = int_to_ptr.vmem [resolvable:$true] %s2118
          %s2120 = sshll.u32 %s2117, 4
          %s2121 = int_to_ptr.hbm [resolvable:$true] %s2120
          %2126 = dma.vmem_to_hbm [thread:$0]  %s2119, 2048, %s2121, %s2106, 64, 64, 4
        $region72: #{tpu_custom_call.1} parent=39 // pred_fallthru
          _
      $region40: #{tpu_custom_call.1} parent=5 // pred_fallthru
        _
      %p2127 = scmp.le.s32.totalorder 2, %s36
      // Predicated region
      $region73: #{tpu_custom_call.1} parent=5 // pred_check
        %p2128 = pneg %p2127
      $region74: #{tpu_custom_call.1} parent=5 // pred_check_branch
        %2130 = sbr.rel (%p2128) target = $region76
      $region75: #{tpu_custom_call.1} parent=5 // pred_region
        %s2131 = ssub.s32 %s36, 2
        // Predicated region
        $region77: #{tpu_custom_call.1} parent=75 // pred_check
          %p2132 = pneg %p229
        $region78: #{tpu_custom_call.1} parent=75 // pred_check_branch
          %2134 = sbr.rel (%p2132) target = $region80
        $region79: #{tpu_custom_call.1} parent=75 // pred_region
          %s2135 = sand.u32 %s214, 1
          %s2136 = scalar_lea.sflag [#allocation8], %s2135
          %s2137 = sand.u32 %s214, 1
          %s2138 = smul.addr %s2137, 128
          %s2139 = scalar_lea.vmem [#allocation14], %s2138
          %2141 = dma.done %s2136, 2048
        $region80: #{tpu_custom_call.1} parent=75 // pred_fallthru
          _
      $region76: #{tpu_custom_call.1} parent=5 // pred_fallthru
        _
    $region6: #{tpu_custom_call.1} parent=1 // loop_footer
      %s40 = sadd.s32 1, %s36
    $region7: #{tpu_custom_call.1} parent=1 // loop_footer_branch
      %35 = sbr.rel target = $region3
    $region8: #{tpu_custom_call.1} parent=1 // loop_exit
      _
    %2142 = vsyncpa [#allocation7], 1
    %s2143 = scalar_lea.sflag [#allocation7], 1
    %2144 = vsyncpa %s2143, 1
    %2145 = vsyncpa [#allocation10], 1
    %s2146 = scalar_lea.sflag [#allocation10], 1
    %2147 = vsyncpa %s2146, 1
    %2148 = vsyncpa [#allocation13], 1
    %2149 = vsyncpa [#allocation8], 1
    %s2150 = scalar_lea.sflag [#allocation8], 1
    %2151 = vsyncpa %s2150, 1

</llo_original>
